<compile_context>
chip_gen: v7x
topology: tpu7x:2x2x1
jax: 0.10.0
libtpu: 0.0.40
codegen_flags: <defaults>
</compile_context>

<pallas_src>
import jax
import jax.numpy as jnp
from jax.experimental import pallas as pl
from jax.experimental.pallas import tpu as pltpu


def _cdiv(a, b):
    return -(-a // b)


def _round_up(a, b):
    return _cdiv(a, b) * b


def sru_kernel(x_ref, w_ref, bias_ref, c0_ref,   # inputs
               h_ref, c_ref,                     # outputs
               uf_ref, rg_ref):                  # VMEM scratch
    """Processes one batch slab: (T, Bt, Din) -> h (T, Bt, H), c_final (Bt, H)."""
    T, Bt, Din = x_ref.shape
    H = c0_ref.shape[-1]
    k = w_ref.shape[-1] // H

    fb = bias_ref[0]                                   # (H,) forget bias
    rb = bias_ref[1]                                   # (H,) reset bias

    # --- hot path 1: one MXU matmul over the whole (T*Bt) slab --------------
    x = x_ref[...]
    x_mm = x if x.dtype == jnp.bfloat16 else x.astype(jnp.bfloat16)
    u = jnp.dot(x_mm.reshape(T * Bt, Din), w_ref[...],
                preferred_element_type=jnp.float32).reshape(T, Bt, k * H)

    # Per-gate, lane-dense slice stores (H % 128 == 0) -- no concatenate temp.
    f = jax.nn.sigmoid(u[:, :, H:2 * H] + fb)          # forget gate (f32)
    uf_ref[:, :, 0:H] = u[:, :, 0:H] * (1.0 - f)       # pre = x_tilde * (1-f)
    uf_ref[:, :, H:2 * H] = f
    rg_ref[:, :, 0:H] = jax.nn.sigmoid(u[:, :, 2 * H:3 * H] + rb
                                       ).astype(rg_ref.dtype)   # reset (bf16)
    if k == 4:
        rg_ref[:, :, H:2 * H] = u[:, :, 3 * H:4 * H].astype(rg_ref.dtype)

    # --- hot path 2: serial recurrence with the h epilogue fused in ---------
    # Only c_t = pre[t] + c_prev * f[t] sits on the carried dependency; the
    # tanh (EUP) and the reset/highway mix are off-chain and overlap it.
    def body(t, c_prev):
        c_t = uf_ref[t, :, 0:H] + c_prev * uf_ref[t, :, H:2 * H]
        r_t = rg_ref[t, :, 0:H].astype(jnp.float32)
        if k == 4:
            xp_t = rg_ref[t, :, H:2 * H].astype(jnp.float32)
        else:
            xp_t = x_ref[t].astype(jnp.float32)        # highway = raw input
        h_t = xp_t * (1.0 - r_t) + jnp.tanh(c_t) * r_t
        h_ref[t] = h_t.astype(h_ref.dtype)             # lane-dense (Bt, H) store
        return c_t

    c_last = jax.lax.fori_loop(0, T, body, c0_ref[...].astype(jnp.float32),
                               unroll=min(8, T))       # bounded unroll
    c_ref[...] = c_last.astype(c_ref.dtype)


def _vmem_budget_bytes():
    """~3/4 of physical VMEM: 48 MiB on v7x (64 MiB/TC), 96 MiB on v5e/v6e."""
    cap = 64 * 1024 * 1024                             # conservative default
    try:
        info = pltpu.get_tpu_info()
        cap_attr = getattr(info, "vmem_capacity_bytes", None)
        if cap_attr:
            cap = int(cap_attr)
    except Exception:
        pass
    return (3 * cap) // 4


def _pick_batch_tile(T, B_pad, Din, H, k, x_in_bytes, h_bytes, budget):
    """Largest Bt (multiple of 8, <= 256) whose footprint fits the budget."""
    per_row = T * (
        2 * H * 4                 # uf scratch (pre, f)              f32
        + (k - 2) * H * 2         # rg scratch (r [, x_prime])       bf16
        + k * H * 4               # matmul result temporary          f32
        + 2 * H * 4               # elementwise temp headroom        f32
        + Din * 2                 # bf16 matmul operand copy
        + 2 * Din * x_in_bytes    # double-buffered x input slab
        + 2 * H * h_bytes         # double-buffered h output slab
    )
    fixed = 4 * 1024 * 1024       # weight, bias, c0/c, misc slack
    bt = max(8, ((budget - fixed) // max(per_row, 1)) // 8 * 8)
    bt = min(bt, 256, B_pad)
    if B_pad >= 16:
        # Guarantee grid >= 2 so the "parallel" batch axis actually shards
        # across both v7x TensorCores (harmless on single-TC v5e/v6e).
        bt = min(bt, _round_up(_cdiv(B_pad, 2), 8))
    return int(bt)


def sru_forward(x, weight, bias, c0, *, batch_tile=None):
    """x: (T, B, D_in), weight: (D_in, H*k), bias: (2*H,), c0: (B, H)."""
    T, B, Din = x.shape
    H = c0.shape[-1]
    k = weight.shape[-1] // H
    assert k in (3, 4)
    if k == 3:
        # highway term reads the raw input, so input_size must equal hidden.
        assert Din == H, "k == 3 requires input_size == hidden_size"
    out_dtype = x.dtype

    # Gate-grouped weight layout: W_g[:, j*H + m] = W[:, m*k + j]  (host glue)
    w_grouped = (weight.reshape(Din, H, k).transpose(0, 2, 1)
                 .reshape(Din, k * H).astype(jnp.bfloat16))
    bias2 = bias.reshape(2, H).astype(jnp.float32)
    # For k == 4 the input is only a matmul operand -> ship it to VMEM bf16.
    x_in = x.astype(jnp.bfloat16) if k == 4 else x
    x_in_bytes = jnp.dtype(x_in.dtype).itemsize
    h_bytes = jnp.dtype(out_dtype).itemsize

    budget = _vmem_budget_bytes()
    # Pad batch to a multiple of 8 so the in-kernel reshape to (T*Bt, Din)
    # stays layout-preserving (no relayout copy before the matmul).
    B_pad = _round_up(B, 8)
    if batch_tile is None:
        Bt = _pick_batch_tile(T, B_pad, Din, H, k, x_in_bytes, h_bytes, budget)
    else:
        Bt = _round_up(int(batch_tile), 8)
    grid = _cdiv(B_pad, Bt)
    B_full = grid * Bt

    if B_full != B:
        pad = B_full - B
        x_in = jnp.pad(x_in, ((0, 0), (0, pad), (0, 0)))
        c0_in = jnp.pad(c0, ((0, pad), (0, 0)))
    else:
        c0_in = c0

    h, c = pl.pallas_call(
        sru_kernel,
        out_shape=(jax.ShapeDtypeStruct((T, B_full, H), out_dtype),
                   jax.ShapeDtypeStruct((B_full, H), jnp.float32)),
        grid_spec=pltpu.PrefetchScalarGridSpec(
            num_scalar_prefetch=0,
            grid=(grid,),
            in_specs=[
                pl.BlockSpec((T, Bt, Din), lambda b: (0, b, 0)),   # x slab
                pl.BlockSpec((Din, k * H), lambda b: (0, 0)),      # W resident
                pl.BlockSpec((2, H), lambda b: (0, 0)),            # bias resident
                pl.BlockSpec((Bt, H), lambda b: (b, 0)),           # c0 slab
            ],
            out_specs=[
                pl.BlockSpec((T, Bt, H), lambda b: (0, b, 0)),     # h slab
                pl.BlockSpec((Bt, H), lambda b: (b, 0)),           # c_final slab
            ],
            scratch_shapes=[
                pltpu.VMEM((T, Bt, 2 * H), jnp.float32),           # pre | f
                pltpu.VMEM((T, Bt, (k - 2) * H), jnp.bfloat16),    # r | x'
            ],
        ),
        compiler_params=pltpu.CompilerParams(
            # Independent batch slabs -> shard across TCs on megacore parts.
            dimension_semantics=("parallel",),
            # Generation-aware scoped-VMEM budget (also used to size Bt).
            vmem_limit_bytes=int(budget),
        ),
    )(x_in, w_grouped, bias2, c0_in)

    if B_full != B:
        h = h[:, :B]
        c = c[:B]
    return h, c


def sru_reference(x, weight, bias, c0):
    """Pure-JAX mirror of the PyTorch _sru_compute_layer semantics (all f32)."""
    T, B, Din = x.shape
    H = c0.shape[-1]
    k = weight.shape[-1] // H
    u = (x.reshape(T * B, Din) @ weight).reshape(T, B, H, k)
    fb, rb = bias.reshape(2, H)
    x_tilde = u[..., 0]
    forget = jax.nn.sigmoid(u[..., 1] + fb)
    reset = jax.nn.sigmoid(u[..., 2] + rb)
    x_prime = x if k == 3 else u[..., 3]

    def step(c_prev, inputs):
        xt, ft, rt, xpt = inputs
        c_t = xt * (1.0 - ft) + c_prev * ft
        h_t = xpt * (1.0 - rt) + jnp.tanh(c_t) * rt
        return c_t, h_t

    c_final, h = jax.lax.scan(step, c0, (x_tilde, forget, reset, x_prime))
    return h, c_final


if __name__ == "__main__":
    key = jax.random.PRNGKey(0)

    def make_case(case_key, T, B, Din, H):
        k = 4 if Din != H else 3
        kw, kx, kc = jax.random.split(case_key, 3)
        # Parameter init matching SRUCell.init_weight():
        #   weight ~ U(-sqrt(3/input_size), sqrt(3/input_size)), bias = 0.
        vr = (3.0 / Din) ** 0.5
        weight = jax.random.uniform(kw, (Din, H * k), jnp.float32, -vr, vr)
        bias = jnp.zeros((2 * H,), jnp.float32)
        x = jax.random.normal(kx, (T, B, Din), jnp.float32)
        c0 = jax.random.normal(kc, (B, H), jnp.float32)
        return x, weight, bias, c0

    k1, k2 = jax.random.split(key)
    TOL = dict(atol=5e-2, rtol=5e-2)   # bf16 MXU operands / bf16 r,x' scratch
                                       # vs the all-f32 reference.

    # Case 1: k == 4 (input_size != hidden_size); default Bt selection gives
    # a 2-step pipelined "parallel" batch grid.
    x, w, b, c0 = make_case(k1, T=8, B=16, Din=64, H=128)
    h, c = sru_forward(x, w, b, c0)
    jax.block_until_ready((h, c))
    h_ref, c_ref = sru_reference(x, w, b, c0)
    assert h.shape == (8, 16, 128) and c.shape == (16, 128)
    assert jnp.allclose(h, h_ref, **TOL), float(jnp.max(jnp.abs(h - h_ref)))
    assert jnp.allclose(c, c_ref, **TOL), float(jnp.max(jnp.abs(c - c_ref)))

    # Case 2: k == 3 (input_size == hidden_size) with a ragged batch (12) that
    # exercises the host-side padding path.
    x, w, b, c0 = make_case(k2, T=6, B=12, Din=128, H=128)
    h, c = sru_forward(x, w, b, c0)
    jax.block_until_ready((h, c))
    h_ref, c_ref = sru_reference(x, w, b, c0)
    assert h.shape == (6, 12, 128) and c.shape == (12, 128)
    assert jnp.allclose(h, h_ref, **TOL), float(jnp.max(jnp.abs(h - h_ref)))
    assert jnp.allclose(c, c_ref, **TOL), float(jnp.max(jnp.abs(c - c_ref)))

    print("KERNEL_OK")
</pallas_src>

<mosaic_0001>
module attributes {stable_mosaic.version = 11 : i64} {
  func.func @sru_kernel(%arg0: i32, %arg1: memref<8x8x64xbf16, #tpu.memory_space<vmem>>, %arg2: memref<64x512xbf16, #tpu.memory_space<vmem>>, %arg3: memref<2x128xf32, #tpu.memory_space<vmem>>, %arg4: memref<8x128xf32, #tpu.memory_space<vmem>>, %arg5: memref<8x8x128xf32, #tpu.memory_space<vmem>>, %arg6: memref<8x128xf32, #tpu.memory_space<vmem>>, %arg7: memref<8x8x256xf32, #tpu.memory_space<vmem>>, %arg8: memref<8x8x256xbf16, #tpu.memory_space<vmem>>) attributes {dimension_semantics = [#tpu.dimension_semantics<parallel>], iteration_bounds = array<i64: 2>, scalar_prefetch = 0 : i64, scratch_operands = 2 : i64, tpu.core_type = #tpu.core_type<tc>, window_params = [{transform_indices = @transform_0, window_bounds = array<i64: 8, 8, 64>}, {pipeline_mode = #tpu.pipeline_mode<synchronous>, transform_indices = @transform_1, window_bounds = array<i64: 64, 512>}, {pipeline_mode = #tpu.pipeline_mode<synchronous>, transform_indices = @transform_2, window_bounds = array<i64: 2, 128>}, {transform_indices = @transform_3, window_bounds = array<i64: 8, 128>}, {transform_indices = @transform_4, window_bounds = array<i64: 8, 8, 128>}, {transform_indices = @transform_5, window_bounds = array<i64: 8, 128>}]} {
    %c0 = arith.constant 0 : index
    %c0_0 = arith.constant 0 : index
    %0 = vector.load %arg3[%c0, %c0_0] : memref<2x128xf32, #tpu.memory_space<vmem>>, vector<1x128xf32>
    %1 = vector.shape_cast %0 : vector<1x128xf32> to vector<128xf32>
    %c1 = arith.constant 1 : index
    %c0_1 = arith.constant 0 : index
    %2 = vector.load %arg3[%c1, %c0_1] : memref<2x128xf32, #tpu.memory_space<vmem>>, vector<1x128xf32>
    %3 = vector.shape_cast %2 : vector<1x128xf32> to vector<128xf32>
    %c0_2 = arith.constant 0 : index
    %c0_3 = arith.constant 0 : index
    %c0_4 = arith.constant 0 : index
    %4 = vector.load %arg1[%c0_2, %c0_3, %c0_4] : memref<8x8x64xbf16, #tpu.memory_space<vmem>>, vector<8x8x64xbf16>
    %5 = vector.shape_cast %4 : vector<8x8x64xbf16> to vector<64x64xbf16>
    %c0_5 = arith.constant 0 : index
    %c0_6 = arith.constant 0 : index
    %6 = vector.load %arg2[%c0_5, %c0_6] : memref<64x512xbf16, #tpu.memory_space<vmem>>, vector<64x512xbf16>
    %cst = arith.constant dense<0.000000e+00> : vector<64x512xf32>
    %7 = tpu.matmul %5, %6, %cst {dimension_numbers = #tpu.dot_dimension_numbers<[1], [0], [0], [1], [0, 0, 1, 1], [], []>} : vector<64x64xbf16>, vector<64x512xbf16>, vector<64x512xf32> -> vector<64x512xf32>
    %8 = vector.shape_cast %7 : vector<64x512xf32> to vector<8x8x512xf32>
    %9 = vector.extract_strided_slice %8 {offsets = [0, 0, 128], sizes = [8, 8, 128], strides = [1, 1, 1]} : vector<8x8x512xf32> to vector<8x8x128xf32>
    %10 = vector.shape_cast %1 : vector<128xf32> to vector<1x1x128xf32>
    %11 = vector.broadcast %10 : vector<1x1x128xf32> to vector<8x8x128xf32>
    %12 = arith.addf %9, %11 : vector<8x8x128xf32>
    %13 = arith.negf %12 : vector<8x8x128xf32>
    %14 = math.exp %13 : vector<8x8x128xf32>
    %cst_7 = arith.constant 1.000000e+00 : f32
    %15 = vector.broadcast %cst_7 : f32 to vector<8x8x128xf32>
    %16 = arith.addf %15, %14 : vector<8x8x128xf32>
    %17 = arith.divf %15, %16 : vector<8x8x128xf32>
    %18 = vector.extract_strided_slice %8 {offsets = [0, 0, 0], sizes = [8, 8, 128], strides = [1, 1, 1]} : vector<8x8x512xf32> to vector<8x8x128xf32>
    %cst_8 = arith.constant 1.000000e+00 : f32
    %19 = vector.broadcast %cst_8 : f32 to vector<8x8x128xf32>
    %20 = arith.subf %19, %17 : vector<8x8x128xf32>
    %21 = arith.mulf %18, %20 : vector<8x8x128xf32>
    %c0_9 = arith.constant 0 : index
    %c0_10 = arith.constant 0 : index
    %c0_11 = arith.constant 0 : index
    %22 = vector.load %arg7[%c0_9, %c0_10, %c0_11] : memref<8x8x256xf32, #tpu.memory_space<vmem>>, vector<8x8x128xf32>
    tpu.vector_store %arg7[%c0_9, %c0_10, %c0_11], %21 {strides = array<i32>} : memref<8x8x256xf32, #tpu.memory_space<vmem>>, vector<8x8x128xf32>,
    %c0_12 = arith.constant 0 : index
    %c0_13 = arith.constant 0 : index
    %c128 = arith.constant 128 : index
    %23 = vector.load %arg7[%c0_12, %c0_13, %c128] : memref<8x8x256xf32, #tpu.memory_space<vmem>>, vector<8x8x128xf32>
    tpu.vector_store %arg7[%c0_12, %c0_13, %c128], %17 {strides = array<i32>} : memref<8x8x256xf32, #tpu.memory_space<vmem>>, vector<8x8x128xf32>,
    %24 = vector.extract_strided_slice %8 {offsets = [0, 0, 256], sizes = [8, 8, 128], strides = [1, 1, 1]} : vector<8x8x512xf32> to vector<8x8x128xf32>
    %25 = vector.shape_cast %3 : vector<128xf32> to vector<1x1x128xf32>
    %26 = vector.broadcast %25 : vector<1x1x128xf32> to vector<8x8x128xf32>
    %27 = arith.addf %24, %26 : vector<8x8x128xf32>
    %28 = arith.negf %27 : vector<8x8x128xf32>
    %29 = math.exp %28 : vector<8x8x128xf32>
    %cst_14 = arith.constant 1.000000e+00 : f32
    %30 = vector.broadcast %cst_14 : f32 to vector<8x8x128xf32>
    %31 = arith.addf %30, %29 : vector<8x8x128xf32>
    %32 = arith.divf %30, %31 : vector<8x8x128xf32>
    %33 = arith.truncf %32 : vector<8x8x128xf32> to vector<8x8x128xbf16>
    %c0_15 = arith.constant 0 : index
    %c0_16 = arith.constant 0 : index
    %c0_17 = arith.constant 0 : index
    %34 = vector.load %arg8[%c0_15, %c0_16, %c0_17] : memref<8x8x256xbf16, #tpu.memory_space<vmem>>, vector<8x8x128xbf16>
    tpu.vector_store %arg8[%c0_15, %c0_16, %c0_17], %33 {strides = array<i32>} : memref<8x8x256xbf16, #tpu.memory_space<vmem>>, vector<8x8x128xbf16>,
    %35 = vector.extract_strided_slice %8 {offsets = [0, 0, 384], sizes = [8, 8, 128], strides = [1, 1, 1]} : vector<8x8x512xf32> to vector<8x8x128xf32>
    %36 = arith.truncf %35 : vector<8x8x128xf32> to vector<8x8x128xbf16>
    %c0_18 = arith.constant 0 : index
    %c0_19 = arith.constant 0 : index
    %c128_20 = arith.constant 128 : index
    %37 = vector.load %arg8[%c0_18, %c0_19, %c128_20] : memref<8x8x256xbf16, #tpu.memory_space<vmem>>, vector<8x8x128xbf16>
    tpu.vector_store %arg8[%c0_18, %c0_19, %c128_20], %36 {strides = array<i32>} : memref<8x8x256xbf16, #tpu.memory_space<vmem>>, vector<8x8x128xbf16>,
    %c0_21 = arith.constant 0 : index
    %c0_22 = arith.constant 0 : index
    %38 = vector.load %arg4[%c0_21, %c0_22] : memref<8x128xf32, #tpu.memory_space<vmem>>, vector<8x128xf32>
    %c0_i32 = arith.constant 0 : i32
    %39 = arith.index_cast %c0_i32 : i32 to index
    %c0_23 = arith.constant 0 : index
    %c0_24 = arith.constant 0 : index
    %40 = vector.load %arg7[%39, %c0_23, %c0_24] : memref<8x8x256xf32, #tpu.memory_space<vmem>>, vector<1x8x128xf32>
    %41 = vector.shape_cast %40 : vector<1x8x128xf32> to vector<8x128xf32>
    %42 = arith.index_cast %c0_i32 : i32 to index
    %c0_25 = arith.constant 0 : index
    %c128_26 = arith.constant 128 : index
    %43 = vector.load %arg7[%42, %c0_25, %c128_26] : memref<8x8x256xf32, #tpu.memory_space<vmem>>, vector<1x8x128xf32>
    %44 = vector.shape_cast %43 : vector<1x8x128xf32> to vector<8x128xf32>
    %45 = arith.mulf %38, %44 : vector<8x128xf32>
    %46 = arith.addf %41, %45 : vector<8x128xf32>
    %47 = arith.index_cast %c0_i32 : i32 to index
    %c0_27 = arith.constant 0 : index
    %c0_28 = arith.constant 0 : index
    %48 = vector.load %arg8[%47, %c0_27, %c0_28] : memref<8x8x256xbf16, #tpu.memory_space<vmem>>, vector<1x8x128xbf16>
    %49 = vector.shape_cast %48 : vector<1x8x128xbf16> to vector<8x128xbf16>
    %50 = arith.extf %49 : vector<8x128xbf16> to vector<8x128xf32>
    %51 = arith.index_cast %c0_i32 : i32 to index
    %c0_29 = arith.constant 0 : index
    %c128_30 = arith.constant 128 : index
    %52 = vector.load %arg8[%51, %c0_29, %c128_30] : memref<8x8x256xbf16, #tpu.memory_space<vmem>>, vector<1x8x128xbf16>
    %53 = vector.shape_cast %52 : vector<1x8x128xbf16> to vector<8x128xbf16>
    %54 = arith.extf %53 : vector<8x128xbf16> to vector<8x128xf32>
    %cst_31 = arith.constant 1.000000e+00 : f32
    %55 = vector.broadcast %cst_31 : f32 to vector<8x128xf32>
    %56 = arith.subf %55, %50 : vector<8x128xf32>
    %57 = arith.mulf %54, %56 : vector<8x128xf32>
    %58 = math.tanh %46 : vector<8x128xf32>
    %59 = arith.mulf %58, %50 : vector<8x128xf32>
    %60 = arith.addf %57, %59 : vector<8x128xf32>
    %61 = arith.index_cast %c0_i32 : i32 to index
    %c0_32 = arith.constant 0 : index
    %c0_33 = arith.constant 0 : index
    %62 = vector.load %arg5[%61, %c0_32, %c0_33] : memref<8x8x128xf32, #tpu.memory_space<vmem>>, vector<1x8x128xf32>
    %63 = vector.shape_cast %62 : vector<1x8x128xf32> to vector<8x128xf32>
    %64 = vector.shape_cast %60 : vector<8x128xf32> to vector<1x8x128xf32>
    tpu.vector_store %arg5[%61, %c0_32, %c0_33], %64 {strides = array<i32>} : memref<8x8x128xf32, #tpu.memory_space<vmem>>, vector<1x8x128xf32>,
    %c1_i32 = arith.constant 1 : i32
    %65 = arith.index_cast %c1_i32 : i32 to index
    %c0_34 = arith.constant 0 : index
    %c0_35 = arith.constant 0 : index
    %66 = vector.load %arg7[%65, %c0_34, %c0_35] : memref<8x8x256xf32, #tpu.memory_space<vmem>>, vector<1x8x128xf32>
    %67 = vector.shape_cast %66 : vector<1x8x128xf32> to vector<8x128xf32>
    %68 = arith.index_cast %c1_i32 : i32 to index
    %c0_36 = arith.constant 0 : index
    %c128_37 = arith.constant 128 : index
    %69 = vector.load %arg7[%68, %c0_36, %c128_37] : memref<8x8x256xf32, #tpu.memory_space<vmem>>, vector<1x8x128xf32>
    %70 = vector.shape_cast %69 : vector<1x8x128xf32> to vector<8x128xf32>
    %71 = arith.mulf %46, %70 : vector<8x128xf32>
    %72 = arith.addf %67, %71 : vector<8x128xf32>
    %73 = arith.index_cast %c1_i32 : i32 to index
    %c0_38 = arith.constant 0 : index
    %c0_39 = arith.constant 0 : index
    %74 = vector.load %arg8[%73, %c0_38, %c0_39] : memref<8x8x256xbf16, #tpu.memory_space<vmem>>, vector<1x8x128xbf16>
    %75 = vector.shape_cast %74 : vector<1x8x128xbf16> to vector<8x128xbf16>
    %76 = arith.extf %75 : vector<8x128xbf16> to vector<8x128xf32>
    %77 = arith.index_cast %c1_i32 : i32 to index
    %c0_40 = arith.constant 0 : index
    %c128_41 = arith.constant 128 : index
    %78 = vector.load %arg8[%77, %c0_40, %c128_41] : memref<8x8x256xbf16, #tpu.memory_space<vmem>>, vector<1x8x128xbf16>
    %79 = vector.shape_cast %78 : vector<1x8x128xbf16> to vector<8x128xbf16>
    %80 = arith.extf %79 : vector<8x128xbf16> to vector<8x128xf32>
    %cst_42 = arith.constant 1.000000e+00 : f32
    %81 = vector.broadcast %cst_42 : f32 to vector<8x128xf32>
    %82 = arith.subf %81, %76 : vector<8x128xf32>
    %83 = arith.mulf %80, %82 : vector<8x128xf32>
    %84 = math.tanh %72 : vector<8x128xf32>
    %85 = arith.mulf %84, %76 : vector<8x128xf32>
    %86 = arith.addf %83, %85 : vector<8x128xf32>
    %87 = arith.index_cast %c1_i32 : i32 to index
    %c0_43 = arith.constant 0 : index
    %c0_44 = arith.constant 0 : index
    %88 = vector.load %arg5[%87, %c0_43, %c0_44] : memref<8x8x128xf32, #tpu.memory_space<vmem>>, vector<1x8x128xf32>
    %89 = vector.shape_cast %88 : vector<1x8x128xf32> to vector<8x128xf32>
    %90 = vector.shape_cast %86 : vector<8x128xf32> to vector<1x8x128xf32>
    tpu.vector_store %arg5[%87, %c0_43, %c0_44], %90 {strides = array<i32>} : memref<8x8x128xf32, #tpu.memory_space<vmem>>, vector<1x8x128xf32>,
    %c2_i32 = arith.constant 2 : i32
    %91 = arith.index_cast %c2_i32 : i32 to index
    %c0_45 = arith.constant 0 : index
    %c0_46 = arith.constant 0 : index
    %92 = vector.load %arg7[%91, %c0_45, %c0_46] : memref<8x8x256xf32, #tpu.memory_space<vmem>>, vector<1x8x128xf32>
    %93 = vector.shape_cast %92 : vector<1x8x128xf32> to vector<8x128xf32>
    %94 = arith.index_cast %c2_i32 : i32 to index
    %c0_47 = arith.constant 0 : index
    %c128_48 = arith.constant 128 : index
    %95 = vector.load %arg7[%94, %c0_47, %c128_48] : memref<8x8x256xf32, #tpu.memory_space<vmem>>, vector<1x8x128xf32>
    %96 = vector.shape_cast %95 : vector<1x8x128xf32> to vector<8x128xf32>
    %97 = arith.mulf %72, %96 : vector<8x128xf32>
    %98 = arith.addf %93, %97 : vector<8x128xf32>
    %99 = arith.index_cast %c2_i32 : i32 to index
    %c0_49 = arith.constant 0 : index
    %c0_50 = arith.constant 0 : index
    %100 = vector.load %arg8[%99, %c0_49, %c0_50] : memref<8x8x256xbf16, #tpu.memory_space<vmem>>, vector<1x8x128xbf16>
    %101 = vector.shape_cast %100 : vector<1x8x128xbf16> to vector<8x128xbf16>
    %102 = arith.extf %101 : vector<8x128xbf16> to vector<8x128xf32>
    %103 = arith.index_cast %c2_i32 : i32 to index
    %c0_51 = arith.constant 0 : index
    %c128_52 = arith.constant 128 : index
    %104 = vector.load %arg8[%103, %c0_51, %c128_52] : memref<8x8x256xbf16, #tpu.memory_space<vmem>>, vector<1x8x128xbf16>
    %105 = vector.shape_cast %104 : vector<1x8x128xbf16> to vector<8x128xbf16>
    %106 = arith.extf %105 : vector<8x128xbf16> to vector<8x128xf32>
    %cst_53 = arith.constant 1.000000e+00 : f32
    %107 = vector.broadcast %cst_53 : f32 to vector<8x128xf32>
    %108 = arith.subf %107, %102 : vector<8x128xf32>
    %109 = arith.mulf %106, %108 : vector<8x128xf32>
    %110 = math.tanh %98 : vector<8x128xf32>
    %111 = arith.mulf %110, %102 : vector<8x128xf32>
    %112 = arith.addf %109, %111 : vector<8x128xf32>
    %113 = arith.index_cast %c2_i32 : i32 to index
    %c0_54 = arith.constant 0 : index
    %c0_55 = arith.constant 0 : index
    %114 = vector.load %arg5[%113, %c0_54, %c0_55] : memref<8x8x128xf32, #tpu.memory_space<vmem>>, vector<1x8x128xf32>
    %115 = vector.shape_cast %114 : vector<1x8x128xf32> to vector<8x128xf32>
    %116 = vector.shape_cast %112 : vector<8x128xf32> to vector<1x8x128xf32>
    tpu.vector_store %arg5[%113, %c0_54, %c0_55], %116 {strides = array<i32>} : memref<8x8x128xf32, #tpu.memory_space<vmem>>, vector<1x8x128xf32>,
    %c3_i32 = arith.constant 3 : i32
    %117 = arith.index_cast %c3_i32 : i32 to index
    %c0_56 = arith.constant 0 : index
    %c0_57 = arith.constant 0 : index
    %118 = vector.load %arg7[%117, %c0_56, %c0_57] : memref<8x8x256xf32, #tpu.memory_space<vmem>>, vector<1x8x128xf32>
    %119 = vector.shape_cast %118 : vector<1x8x128xf32> to vector<8x128xf32>
    %120 = arith.index_cast %c3_i32 : i32 to index
    %c0_58 = arith.constant 0 : index
    %c128_59 = arith.constant 128 : index
    %121 = vector.load %arg7[%120, %c0_58, %c128_59] : memref<8x8x256xf32, #tpu.memory_space<vmem>>, vector<1x8x128xf32>
    %122 = vector.shape_cast %121 : vector<1x8x128xf32> to vector<8x128xf32>
    %123 = arith.mulf %98, %122 : vector<8x128xf32>
    %124 = arith.addf %119, %123 : vector<8x128xf32>
    %125 = arith.index_cast %c3_i32 : i32 to index
    %c0_60 = arith.constant 0 : index
    %c0_61 = arith.constant 0 : index
    %126 = vector.load %arg8[%125, %c0_60, %c0_61] : memref<8x8x256xbf16, #tpu.memory_space<vmem>>, vector<1x8x128xbf16>
    %127 = vector.shape_cast %126 : vector<1x8x128xbf16> to vector<8x128xbf16>
    %128 = arith.extf %127 : vector<8x128xbf16> to vector<8x128xf32>
    %129 = arith.index_cast %c3_i32 : i32 to index
    %c0_62 = arith.constant 0 : index
    %c128_63 = arith.constant 128 : index
    %130 = vector.load %arg8[%129, %c0_62, %c128_63] : memref<8x8x256xbf16, #tpu.memory_space<vmem>>, vector<1x8x128xbf16>
    %131 = vector.shape_cast %130 : vector<1x8x128xbf16> to vector<8x128xbf16>
    %132 = arith.extf %131 : vector<8x128xbf16> to vector<8x128xf32>
    %cst_64 = arith.constant 1.000000e+00 : f32
    %133 = vector.broadcast %cst_64 : f32 to vector<8x128xf32>
    %134 = arith.subf %133, %128 : vector<8x128xf32>
    %135 = arith.mulf %132, %134 : vector<8x128xf32>
    %136 = math.tanh %124 : vector<8x128xf32>
    %137 = arith.mulf %136, %128 : vector<8x128xf32>
    %138 = arith.addf %135, %137 : vector<8x128xf32>
    %139 = arith.index_cast %c3_i32 : i32 to index
    %c0_65 = arith.constant 0 : index
    %c0_66 = arith.constant 0 : index
    %140 = vector.load %arg5[%139, %c0_65, %c0_66] : memref<8x8x128xf32, #tpu.memory_space<vmem>>, vector<1x8x128xf32>
    %141 = vector.shape_cast %140 : vector<1x8x128xf32> to vector<8x128xf32>
    %142 = vector.shape_cast %138 : vector<8x128xf32> to vector<1x8x128xf32>
    tpu.vector_store %arg5[%139, %c0_65, %c0_66], %142 {strides = array<i32>} : memref<8x8x128xf32, #tpu.memory_space<vmem>>, vector<1x8x128xf32>,
    %c4_i32 = arith.constant 4 : i32
    %143 = arith.index_cast %c4_i32 : i32 to index
    %c0_67 = arith.constant 0 : index
    %c0_68 = arith.constant 0 : index
    %144 = vector.load %arg7[%143, %c0_67, %c0_68] : memref<8x8x256xf32, #tpu.memory_space<vmem>>, vector<1x8x128xf32>
    %145 = vector.shape_cast %144 : vector<1x8x128xf32> to vector<8x128xf32>
    %146 = arith.index_cast %c4_i32 : i32 to index
    %c0_69 = arith.constant 0 : index
    %c128_70 = arith.constant 128 : index
    %147 = vector.load %arg7[%146, %c0_69, %c128_70] : memref<8x8x256xf32, #tpu.memory_space<vmem>>, vector<1x8x128xf32>
    %148 = vector.shape_cast %147 : vector<1x8x128xf32> to vector<8x128xf32>
    %149 = arith.mulf %124, %148 : vector<8x128xf32>
    %150 = arith.addf %145, %149 : vector<8x128xf32>
    %151 = arith.index_cast %c4_i32 : i32 to index
    %c0_71 = arith.constant 0 : index
    %c0_72 = arith.constant 0 : index
    %152 = vector.load %arg8[%151, %c0_71, %c0_72] : memref<8x8x256xbf16, #tpu.memory_space<vmem>>, vector<1x8x128xbf16>
    %153 = vector.shape_cast %152 : vector<1x8x128xbf16> to vector<8x128xbf16>
    %154 = arith.extf %153 : vector<8x128xbf16> to vector<8x128xf32>
    %155 = arith.index_cast %c4_i32 : i32 to index
    %c0_73 = arith.constant 0 : index
    %c128_74 = arith.constant 128 : index
    %156 = vector.load %arg8[%155, %c0_73, %c128_74] : memref<8x8x256xbf16, #tpu.memory_space<vmem>>, vector<1x8x128xbf16>
    %157 = vector.shape_cast %156 : vector<1x8x128xbf16> to vector<8x128xbf16>
    %158 = arith.extf %157 : vector<8x128xbf16> to vector<8x128xf32>
    %cst_75 = arith.constant 1.000000e+00 : f32
    %159 = vector.broadcast %cst_75 : f32 to vector<8x128xf32>
    %160 = arith.subf %159, %154 : vector<8x128xf32>
    %161 = arith.mulf %158, %160 : vector<8x128xf32>
    %162 = math.tanh %150 : vector<8x128xf32>
    %163 = arith.mulf %162, %154 : vector<8x128xf32>
    %164 = arith.addf %161, %163 : vector<8x128xf32>
    %165 = arith.index_cast %c4_i32 : i32 to index
    %c0_76 = arith.constant 0 : index
    %c0_77 = arith.constant 0 : index
    %166 = vector.load %arg5[%165, %c0_76, %c0_77] : memref<8x8x128xf32, #tpu.memory_space<vmem>>, vector<1x8x128xf32>
    %167 = vector.shape_cast %166 : vector<1x8x128xf32> to vector<8x128xf32>
    %168 = vector.shape_cast %164 : vector<8x128xf32> to vector<1x8x128xf32>
    tpu.vector_store %arg5[%165, %c0_76, %c0_77], %168 {strides = array<i32>} : memref<8x8x128xf32, #tpu.memory_space<vmem>>, vector<1x8x128xf32>,
    %c5_i32 = arith.constant 5 : i32
    %169 = arith.index_cast %c5_i32 : i32 to index
    %c0_78 = arith.constant 0 : index
    %c0_79 = arith.constant 0 : index
    %170 = vector.load %arg7[%169, %c0_78, %c0_79] : memref<8x8x256xf32, #tpu.memory_space<vmem>>, vector<1x8x128xf32>
    %171 = vector.shape_cast %170 : vector<1x8x128xf32> to vector<8x128xf32>
    %172 = arith.index_cast %c5_i32 : i32 to index
    %c0_80 = arith.constant 0 : index
    %c128_81 = arith.constant 128 : index
    %173 = vector.load %arg7[%172, %c0_80, %c128_81] : memref<8x8x256xf32, #tpu.memory_space<vmem>>, vector<1x8x128xf32>
    %174 = vector.shape_cast %173 : vector<1x8x128xf32> to vector<8x128xf32>
    %175 = arith.mulf %150, %174 : vector<8x128xf32>
    %176 = arith.addf %171, %175 : vector<8x128xf32>
    %177 = arith.index_cast %c5_i32 : i32 to index
    %c0_82 = arith.constant 0 : index
    %c0_83 = arith.constant 0 : index
    %178 = vector.load %arg8[%177, %c0_82, %c0_83] : memref<8x8x256xbf16, #tpu.memory_space<vmem>>, vector<1x8x128xbf16>
    %179 = vector.shape_cast %178 : vector<1x8x128xbf16> to vector<8x128xbf16>
    %180 = arith.extf %179 : vector<8x128xbf16> to vector<8x128xf32>
    %181 = arith.index_cast %c5_i32 : i32 to index
    %c0_84 = arith.constant 0 : index
    %c128_85 = arith.constant 128 : index
    %182 = vector.load %arg8[%181, %c0_84, %c128_85] : memref<8x8x256xbf16, #tpu.memory_space<vmem>>, vector<1x8x128xbf16>
    %183 = vector.shape_cast %182 : vector<1x8x128xbf16> to vector<8x128xbf16>
    %184 = arith.extf %183 : vector<8x128xbf16> to vector<8x128xf32>
    %cst_86 = arith.constant 1.000000e+00 : f32
    %185 = vector.broadcast %cst_86 : f32 to vector<8x128xf32>
    %186 = arith.subf %185, %180 : vector<8x128xf32>
    %187 = arith.mulf %184, %186 : vector<8x128xf32>
    %188 = math.tanh %176 : vector<8x128xf32>
    %189 = arith.mulf %188, %180 : vector<8x128xf32>
    %190 = arith.addf %187, %189 : vector<8x128xf32>
    %191 = arith.index_cast %c5_i32 : i32 to index
    %c0_87 = arith.constant 0 : index
    %c0_88 = arith.constant 0 : index
    %192 = vector.load %arg5[%191, %c0_87, %c0_88] : memref<8x8x128xf32, #tpu.memory_space<vmem>>, vector<1x8x128xf32>
    %193 = vector.shape_cast %192 : vector<1x8x128xf32> to vector<8x128xf32>
    %194 = vector.shape_cast %190 : vector<8x128xf32> to vector<1x8x128xf32>
    tpu.vector_store %arg5[%191, %c0_87, %c0_88], %194 {strides = array<i32>} : memref<8x8x128xf32, #tpu.memory_space<vmem>>, vector<1x8x128xf32>,
    %c6_i32 = arith.constant 6 : i32
    %195 = arith.index_cast %c6_i32 : i32 to index
    %c0_89 = arith.constant 0 : index
    %c0_90 = arith.constant 0 : index
    %196 = vector.load %arg7[%195, %c0_89, %c0_90] : memref<8x8x256xf32, #tpu.memory_space<vmem>>, vector<1x8x128xf32>
    %197 = vector.shape_cast %196 : vector<1x8x128xf32> to vector<8x128xf32>
    %198 = arith.index_cast %c6_i32 : i32 to index
    %c0_91 = arith.constant 0 : index
    %c128_92 = arith.constant 128 : index
    %199 = vector.load %arg7[%198, %c0_91, %c128_92] : memref<8x8x256xf32, #tpu.memory_space<vmem>>, vector<1x8x128xf32>
    %200 = vector.shape_cast %199 : vector<1x8x128xf32> to vector<8x128xf32>
    %201 = arith.mulf %176, %200 : vector<8x128xf32>
    %202 = arith.addf %197, %201 : vector<8x128xf32>
    %203 = arith.index_cast %c6_i32 : i32 to index
    %c0_93 = arith.constant 0 : index
    %c0_94 = arith.constant 0 : index
    %204 = vector.load %arg8[%203, %c0_93, %c0_94] : memref<8x8x256xbf16, #tpu.memory_space<vmem>>, vector<1x8x128xbf16>
    %205 = vector.shape_cast %204 : vector<1x8x128xbf16> to vector<8x128xbf16>
    %206 = arith.extf %205 : vector<8x128xbf16> to vector<8x128xf32>
    %207 = arith.index_cast %c6_i32 : i32 to index
    %c0_95 = arith.constant 0 : index
    %c128_96 = arith.constant 128 : index
    %208 = vector.load %arg8[%207, %c0_95, %c128_96] : memref<8x8x256xbf16, #tpu.memory_space<vmem>>, vector<1x8x128xbf16>
    %209 = vector.shape_cast %208 : vector<1x8x128xbf16> to vector<8x128xbf16>
    %210 = arith.extf %209 : vector<8x128xbf16> to vector<8x128xf32>
    %cst_97 = arith.constant 1.000000e+00 : f32
    %211 = vector.broadcast %cst_97 : f32 to vector<8x128xf32>
    %212 = arith.subf %211, %206 : vector<8x128xf32>
    %213 = arith.mulf %210, %212 : vector<8x128xf32>
    %214 = math.tanh %202 : vector<8x128xf32>
    %215 = arith.mulf %214, %206 : vector<8x128xf32>
    %216 = arith.addf %213, %215 : vector<8x128xf32>
    %217 = arith.index_cast %c6_i32 : i32 to index
    %c0_98 = arith.constant 0 : index
    %c0_99 = arith.constant 0 : index
    %218 = vector.load %arg5[%217, %c0_98, %c0_99] : memref<8x8x128xf32, #tpu.memory_space<vmem>>, vector<1x8x128xf32>
    %219 = vector.shape_cast %218 : vector<1x8x128xf32> to vector<8x128xf32>
    %220 = vector.shape_cast %216 : vector<8x128xf32> to vector<1x8x128xf32>
    tpu.vector_store %arg5[%217, %c0_98, %c0_99], %220 {strides = array<i32>} : memref<8x8x128xf32, #tpu.memory_space<vmem>>, vector<1x8x128xf32>,
    %c7_i32 = arith.constant 7 : i32
    %221 = arith.index_cast %c7_i32 : i32 to index
    %c0_100 = arith.constant 0 : index
    %c0_101 = arith.constant 0 : index
    %222 = vector.load %arg7[%221, %c0_100, %c0_101] : memref<8x8x256xf32, #tpu.memory_space<vmem>>, vector<1x8x128xf32>
    %223 = vector.shape_cast %222 : vector<1x8x128xf32> to vector<8x128xf32>
    %224 = arith.index_cast %c7_i32 : i32 to index
    %c0_102 = arith.constant 0 : index
    %c128_103 = arith.constant 128 : index
    %225 = vector.load %arg7[%224, %c0_102, %c128_103] : memref<8x8x256xf32, #tpu.memory_space<vmem>>, vector<1x8x128xf32>
    %226 = vector.shape_cast %225 : vector<1x8x128xf32> to vector<8x128xf32>
    %227 = arith.mulf %202, %226 : vector<8x128xf32>
    %228 = arith.addf %223, %227 : vector<8x128xf32>
    %229 = arith.index_cast %c7_i32 : i32 to index
    %c0_104 = arith.constant 0 : index
    %c0_105 = arith.constant 0 : index
    %230 = vector.load %arg8[%229, %c0_104, %c0_105] : memref<8x8x256xbf16, #tpu.memory_space<vmem>>, vector<1x8x128xbf16>
    %231 = vector.shape_cast %230 : vector<1x8x128xbf16> to vector<8x128xbf16>
    %232 = arith.extf %231 : vector<8x128xbf16> to vector<8x128xf32>
    %233 = arith.index_cast %c7_i32 : i32 to index
    %c0_106 = arith.constant 0 : index
    %c128_107 = arith.constant 128 : index
    %234 = vector.load %arg8[%233, %c0_106, %c128_107] : memref<8x8x256xbf16, #tpu.memory_space<vmem>>, vector<1x8x128xbf16>
    %235 = vector.shape_cast %234 : vector<1x8x128xbf16> to vector<8x128xbf16>
    %236 = arith.extf %235 : vector<8x128xbf16> to vector<8x128xf32>
    %cst_108 = arith.constant 1.000000e+00 : f32
    %237 = vector.broadcast %cst_108 : f32 to vector<8x128xf32>
    %238 = arith.subf %237, %232 : vector<8x128xf32>
    %239 = arith.mulf %236, %238 : vector<8x128xf32>
    %240 = math.tanh %228 : vector<8x128xf32>
    %241 = arith.mulf %240, %232 : vector<8x128xf32>
    %242 = arith.addf %239, %241 : vector<8x128xf32>
    %243 = arith.index_cast %c7_i32 : i32 to index
    %c0_109 = arith.constant 0 : index
    %c0_110 = arith.constant 0 : index
    %244 = vector.load %arg5[%243, %c0_109, %c0_110] : memref<8x8x128xf32, #tpu.memory_space<vmem>>, vector<1x8x128xf32>
    %245 = vector.shape_cast %244 : vector<1x8x128xf32> to vector<8x128xf32>
    %246 = vector.shape_cast %242 : vector<8x128xf32> to vector<1x8x128xf32>
    tpu.vector_store %arg5[%243, %c0_109, %c0_110], %246 {strides = array<i32>} : memref<8x8x128xf32, #tpu.memory_space<vmem>>, vector<1x8x128xf32>,
    %c8_i32 = arith.constant 8 : i32
    %c0_111 = arith.constant 0 : index
    %c0_112 = arith.constant 0 : index
    %247 = vector.load %arg6[%c0_111, %c0_112] : memref<8x128xf32, #tpu.memory_space<vmem>>, vector<8x128xf32>
    tpu.vector_store %arg6[%c0_111, %c0_112], %228 {strides = array<i32>} : memref<8x128xf32, #tpu.memory_space<vmem>>, vector<8x128xf32>,
    return
  }
  func.func @transform_0(%arg0: i32) -> (i32, i32, i32) {
    %c0_i32 = arith.constant 0 : i32
    %c0_i32_0 = arith.constant 0 : i32
    %c0_i32_1 = arith.constant 0 : i32
    return %c0_i32, %arg0, %c0_i32_0 : i32, i32, i32
  }
  func.func @transform_1(%arg0: i32) -> (i32, i32) {
    %c0_i32 = arith.constant 0 : i32
    %c0_i32_0 = arith.constant 0 : i32
    %c0_i32_1 = arith.constant 0 : i32
    return %c0_i32, %c0_i32_0 : i32, i32
  }
  func.func @transform_2(%arg0: i32) -> (i32, i32) {
    %c0_i32 = arith.constant 0 : i32
    %c0_i32_0 = arith.constant 0 : i32
    %c0_i32_1 = arith.constant 0 : i32
    return %c0_i32, %c0_i32_0 : i32, i32
  }
  func.func @transform_3(%arg0: i32) -> (i32, i32) {
    %c0_i32 = arith.constant 0 : i32
    %c0_i32_0 = arith.constant 0 : i32
    return %arg0, %c0_i32 : i32, i32
  }
  func.func @transform_4(%arg0: i32) -> (i32, i32, i32) {
    %c0_i32 = arith.constant 0 : i32
    %c0_i32_0 = arith.constant 0 : i32
    %c0_i32_1 = arith.constant 0 : i32
    return %c0_i32, %arg0, %c0_i32_0 : i32, i32, i32
  }
  func.func @transform_5(%arg0: i32) -> (i32, i32) {
    %c0_i32 = arith.constant 0 : i32
    %c0_i32_0 = arith.constant 0 : i32
    return %arg0, %c0_i32 : i32, i32
  }
}

</mosaic_0001>

<llo_original>
// kernel: tpu_custom_call.1
$region0: #{tpu_custom_call.1}
  #allocation0 [shape = 'u32[]', space=smem, size = 0x4, offset = 0x4, fixed_abs, tag = 'smem constant byte address 0x4 - core index']
  #allocation1 [shape = 'u32[144,128]{1,0:T(1,128)}', space=vmem, size = 0x12000, scoped, tag = 'internal scratch']
  #allocation2 [shape = 'f32[8,8,256]{2,1,0:T(8,128)}', space=vmem, size = 0x10000, scoped, tag = 'scratch operand']
  #allocation3 [shape = 'bf16[8,8,256]{2,1,0:T(8,128)(2,1)}', space=vmem, size = 0x8000, scoped, tag = 'scratch operand']
  %s0 = inlined_call_operand.hbm [shape: bf16[8,16,64], index: 0, kind: input, shape index: {}]
  %s1 = inlined_call_operand.hbm [shape: bf16[64,512], index: 1, kind: input, shape index: {}]
  %s2 = inlined_call_operand.vmem [shape: f32[2,128], index: 2, kind: input, shape index: {}]
  %s3 = inlined_call_operand.hbm [shape: f32[16,128], index: 3, kind: input, shape index: {}]
  %s4 = inlined_call_operand.hbm [shape: f32[8,16,128], index: 4, kind: output, shape index: {0}]
  %s5 = inlined_call_operand.hbm [shape: f32[16,128], index: 5, kind: output, shape index: {1}]
  %6 = xla_tuple %s4, %s5
  %s7 = sld [smem:[#allocation0]]
  $region69: #{tpu_custom_call.1} parent=0
    _
  %s9 = ssub.s32 1, %s7
  %s10 = scalar_select 0, %s9, %s7
  $region1: #{tpu_custom_call.1} parent=0
    #allocation4 [shape = 'u8[32768]{0}', space=vmem, size = 0x8000, scoped, tag = 'input window, operand 0']
    #allocation5 [shape = 's32[2]{0}', space=sflag, size = 0x8, scoped, tag = 'scoped memory for tpu_custom_call.1']
    #allocation6 [shape = 's32[2]{0}', space=sflag, size = 0x8, scoped, tag = 'scoped memory for tpu_custom_call.1']
    #allocation7 [shape = 'u8[65536]{0}', space=vmem, size = 0x10000, scoped, tag = 'input window, operand 1, single buffered']
    #allocation8 [shape = 's32[1]{0}', space=sflag, size = 0x4, scoped, tag = 'scoped memory for tpu_custom_call.1']
    #allocation9 [shape = 'u8[8192]{0}', space=vmem, size = 0x2000, scoped, tag = 'input window, operand 3']
    #allocation10 [shape = 'u8[65536]{0}', space=vmem, size = 0x10000, scoped, tag = 'output window, operand 0']
    #allocation11 [shape = 'u8[8192]{0}', space=vmem, size = 0x2000, scoped, tag = 'output window, operand 1']
    #allocation12 [shape = 's32[2]{0}', space=sflag, size = 0x8, scoped, tag = 'scoped memory for tpu_custom_call.1']
    %11 = vsyncpa [#allocation5], 0
    %s12 = scalar_lea.sflag [#allocation5], 1
    %13 = vsyncpa %s12, 0
    %14 = vsyncpa [#allocation8], 0
    %15 = vsyncpa [#allocation6], 0
    %s16 = scalar_lea.sflag [#allocation6], 1
    %17 = vsyncpa %s16, 0
    %18 = vsyncpa [#allocation12], 0
    %s19 = scalar_lea.sflag [#allocation12], 1
    %20 = vsyncpa %s19, 0
    loop: start=0, step=1, limit=4
    $region2: #{tpu_custom_call.1} parent=1 // loop_pre_header
      _
    $region3: #{tpu_custom_call.1} parent=1 // loop_header
      %s22 = sphi 0, %s26
      %p23 = scmp.ge.s32.totalorder %s22, 4
      %s32 = sphi 0, %s34
      %s35 = sphi 0, %s32
      %s36 = sphi 0, %s35
      %s52 = sphi 0, %s36
      %s56 = sphi 0, %s56
      %s58 = sphi 0, %s56
      %s59 = sphi 0, %s58
      %s73 = sphi 0, %s59
      %s77 = sphi 0, %s77
      %s79 = sphi 0, %s77
      %s80 = sphi 0, %s79
      %s94 = sphi 0, %s80
      %s100 = sphi 0, %s102
      %s103 = sphi 0, %s100
      %s104 = sphi 0, %s103
      %s120 = sphi 0, %s104
      %s126 = sphi 0, %s128
      %s129 = sphi 0, %s126
      %s130 = sphi 0, %s129
      %s146 = sphi 0, %s130
      %s152 = sphi 0, %s154
      %s155 = sphi 0, %s152
      %s156 = sphi 0, %s155
      %s172 = sphi 0, %s156
    $region4: #{tpu_custom_call.1} parent=1 // loop_header_branch
      %25 = sbr.rel (%p23) target = $region8
    $region5: #{tpu_custom_call.1} parent=1 // loop_body
      %s27 = ssub.s32 %s22, 1
      %s28 = ssub.s32 %s22, 2
      %s29 = sadd.s32 %s22, 1
      %s30 = ssub.s32 %s22, %s29
      %p31 = scmp.eq.s32.totalorder %s30, 0
      %s33 = sadd.s32 %s32, 1
      %s34 = scalar_select %p31, %s32, %s33
      %p37 = pneg %p31
      %p38 = scmp.eq.s32.totalorder %s22, 1
      %p39 = por %p37, %p38
      %p40 = scmp.ne.s32.totalorder %s32, %s35
      %p41 = scmp.eq.s32.totalorder %s22, 0
      %p42 = por %p40, %p41
      %p43 = scmp.ne.s32.totalorder %s32, %s35
      %p44 = scmp.eq.s32.totalorder %s27, 1
      %p45 = por %p43, %p44
      %p46 = scmp.ne.s32.totalorder %s35, %s36
      %p47 = scmp.eq.s32.totalorder %s27, 0
      %p48 = por %p46, %p47
      %p49 = scmp.ne.s32.totalorder %s35, %s36
      %p50 = scmp.eq.s32.totalorder %s28, 1
      %p51 = por %p49, %p50
      %p53 = scmp.ne.s32.totalorder %s36, %s52
      %p54 = scmp.eq.s32.totalorder %s28, 0
      %p55 = por %p53, %p54
      %s57 = sadd.s32 %s56, 1
      %p60 = scmp.eq.s32.totalorder %s22, 1
      %p61 = scmp.ne.s32.totalorder %s56, %s58
      %p62 = scmp.eq.s32.totalorder %s22, 0
      %p63 = por %p61, %p62
      %p64 = scmp.ne.s32.totalorder %s56, %s58
      %p65 = scmp.eq.s32.totalorder %s27, 1
      %p66 = por %p64, %p65
      %p67 = scmp.ne.s32.totalorder %s58, %s59
      %p68 = scmp.eq.s32.totalorder %s27, 0
      %p69 = por %p67, %p68
      %p70 = scmp.ne.s32.totalorder %s58, %s59
      %p71 = scmp.eq.s32.totalorder %s28, 1
      %p72 = por %p70, %p71
      %p74 = scmp.ne.s32.totalorder %s59, %s73
      %p75 = scmp.eq.s32.totalorder %s28, 0
      %p76 = por %p74, %p75
      %s78 = sadd.s32 %s77, 1
      %p81 = scmp.eq.s32.totalorder %s22, 1
      %p82 = scmp.ne.s32.totalorder %s77, %s79
      %p83 = scmp.eq.s32.totalorder %s22, 0
      %p84 = por %p82, %p83
      %p85 = scmp.ne.s32.totalorder %s77, %s79
      %p86 = scmp.eq.s32.totalorder %s27, 1
      %p87 = por %p85, %p86
      %p88 = scmp.ne.s32.totalorder %s79, %s80
      %p89 = scmp.eq.s32.totalorder %s27, 0
      %p90 = por %p88, %p89
      %p91 = scmp.ne.s32.totalorder %s79, %s80
      %p92 = scmp.eq.s32.totalorder %s28, 1
      %p93 = por %p91, %p92
      %p95 = scmp.ne.s32.totalorder %s80, %s94
      %p96 = scmp.eq.s32.totalorder %s28, 0
      %p97 = por %p95, %p96
      %s98 = ssub.s32 %s22, %s29
      %p99 = scmp.eq.s32.totalorder %s98, 0
      %s101 = sadd.s32 %s100, 1
      %s102 = scalar_select %p99, %s100, %s101
      %p105 = pneg %p99
      %p106 = scmp.eq.s32.totalorder %s22, 1
      %p107 = por %p105, %p106
      %p108 = scmp.ne.s32.totalorder %s100, %s103
      %p109 = scmp.eq.s32.totalorder %s22, 0
      %p110 = por %p108, %p109
      %p111 = scmp.ne.s32.totalorder %s100, %s103
      %p112 = scmp.eq.s32.totalorder %s27, 1
      %p113 = por %p111, %p112
      %p114 = scmp.ne.s32.totalorder %s103, %s104
      %p115 = scmp.eq.s32.totalorder %s27, 0
      %p116 = por %p114, %p115
      %p117 = scmp.ne.s32.totalorder %s103, %s104
      %p118 = scmp.eq.s32.totalorder %s28, 1
      %p119 = por %p117, %p118
      %p121 = scmp.ne.s32.totalorder %s104, %s120
      %p122 = scmp.eq.s32.totalorder %s28, 0
      %p123 = por %p121, %p122
      %s124 = ssub.s32 %s22, %s29
      %p125 = scmp.eq.s32.totalorder %s124, 0
      %s127 = sadd.s32 %s126, 1
      %s128 = scalar_select %p125, %s126, %s127
      %p131 = pneg %p125
      %p132 = scmp.eq.s32.totalorder %s22, 1
      %p133 = por %p131, %p132
      %p134 = scmp.ne.s32.totalorder %s126, %s129
      %p135 = scmp.eq.s32.totalorder %s22, 0
      %p136 = por %p134, %p135
      %p137 = scmp.ne.s32.totalorder %s126, %s129
      %p138 = scmp.eq.s32.totalorder %s27, 1
      %p139 = por %p137, %p138
      %p140 = scmp.ne.s32.totalorder %s129, %s130
      %p141 = scmp.eq.s32.totalorder %s27, 0
      %p142 = por %p140, %p141
      %p143 = scmp.ne.s32.totalorder %s129, %s130
      %p144 = scmp.eq.s32.totalorder %s28, 1
      %p145 = por %p143, %p144
      %p147 = scmp.ne.s32.totalorder %s130, %s146
      %p148 = scmp.eq.s32.totalorder %s28, 0
      %p149 = por %p147, %p148
      %s150 = ssub.s32 %s22, %s29
      %p151 = scmp.eq.s32.totalorder %s150, 0
      %s153 = sadd.s32 %s152, 1
      %s154 = scalar_select %p151, %s152, %s153
      %p157 = pneg %p151
      %p158 = scmp.eq.s32.totalorder %s22, 1
      %p159 = por %p157, %p158
      %p160 = scmp.ne.s32.totalorder %s152, %s155
      %p161 = scmp.eq.s32.totalorder %s22, 0
      %p162 = por %p160, %p161
      %p163 = scmp.ne.s32.totalorder %s152, %s155
      %p164 = scmp.eq.s32.totalorder %s27, 1
      %p165 = por %p163, %p164
      %p166 = scmp.ne.s32.totalorder %s155, %s156
      %p167 = scmp.eq.s32.totalorder %s27, 0
      %p168 = por %p166, %p167
      %p169 = scmp.ne.s32.totalorder %s155, %s156
      %p170 = scmp.eq.s32.totalorder %s28, 1
      %p171 = por %p169, %p170
      %p173 = scmp.ne.s32.totalorder %s156, %s172
      %p174 = scmp.eq.s32.totalorder %s28, 0
      %p175 = por %p173, %p174
      %p176 = scmp.le.s32.totalorder 1, %s22
      %p177 = scmp.lt.s32.totalorder %s22, 3
      %p178 = pnand %p176, %p177
      %p179 = pneg %p178
      // Predicated region
      $region9: #{tpu_custom_call.1} parent=5 // pred_check
        _
      $region10: #{tpu_custom_call.1} parent=5 // pred_check_branch
        %181 = sbr.rel (%p178) target = $region12
      $region11: #{tpu_custom_call.1} parent=5 // pred_region
        %s182 = ssub.s32 %s22, 1
        // Predicated region
        $region13: #{tpu_custom_call.1} parent=11 // pred_check
          %p183 = pneg %p69
        $region14: #{tpu_custom_call.1} parent=11 // pred_check_branch
          %185 = sbr.rel (%p183) target = $region16
        $region15: #{tpu_custom_call.1} parent=11 // pred_region
          %s187 = ssub.s32 2048, 2048
          %188 = vsyncadd [#allocation8], %s187
          %s189 = sshll.u32 [#allocation7], 4
          %s190 = int_to_ptr.vmem [resolvable:$true] %s189
          %195 = dma.hbm_to_vmem [thread:$0]  %s1, 2048, %s190, [#allocation8], 256, 256, 16
        $region16: #{tpu_custom_call.1} parent=11 // pred_fallthru
          _
        // Predicated region
        $region17: #{tpu_custom_call.1} parent=11 // pred_check
          %p196 = pneg %p90
        $region18: #{tpu_custom_call.1} parent=11 // pred_check_branch
          %198 = sbr.rel (%p196) target = $region20
        $region19: #{tpu_custom_call.1} parent=11 // pred_region
          _
        $region20: #{tpu_custom_call.1} parent=11 // pred_fallthru
          _
      $region12: #{tpu_custom_call.1} parent=5 // pred_fallthru
        _
      %p199 = scmp.lt.s32.totalorder %s22, 2
      // Predicated region
      $region21: #{tpu_custom_call.1} parent=5 // pred_check
        %p200 = pneg %p199
      $region22: #{tpu_custom_call.1} parent=5 // pred_check_branch
        %202 = sbr.rel (%p200) target = $region24
      $region23: #{tpu_custom_call.1} parent=5 // pred_region
        // Predicated region
        $region25: #{tpu_custom_call.1} parent=23 // pred_check
          %p203 = pneg %p42
        $region26: #{tpu_custom_call.1} parent=23 // pred_check_branch
          %205 = sbr.rel (%p203) target = $region28
        $region27: #{tpu_custom_call.1} parent=23 // pred_region
          %s206 = sand.u32 %s22, 1
          %s207 = scalar_lea.sflag [#allocation5], %s206
          %s208 = sand.u32 %s32, 1
          %s209 = smul.addr %s208, 32
          %s210 = scalar_lea.vmem [#allocation4], %s209
          %s212 = ssub.s32 512, 512
          %213 = vsyncadd %s207, %s212
          %s214 = smul.addr %s22, 64
          %s215 = scalar_lea.hbm %s0, %s214
          %s216 = sshll.u32 %s210, 4
          %s217 = int_to_ptr.vmem [resolvable:$true] %s216
          %222 = dma.hbm_to_vmem [thread:$0]  %s215, 512, %s217, %s207, 128, 64, 4
        $region28: #{tpu_custom_call.1} parent=23 // pred_fallthru
          _
        // Predicated region
        $region29: #{tpu_custom_call.1} parent=23 // pred_check
          %p223 = pneg %p110
        $region30: #{tpu_custom_call.1} parent=23 // pred_check_branch
          %225 = sbr.rel (%p223) target = $region32
        $region31: #{tpu_custom_call.1} parent=23 // pred_region
          %s226 = sand.u32 %s22, 1
          %s227 = scalar_lea.sflag [#allocation5], %s226
          %s228 = sand.u32 %s100, 1
          %s229 = smul.addr %s228, 8
          %s230 = scalar_lea.vmem [#allocation9], %s229
          %s232 = ssub.s32 128, 128
          %233 = vsyncadd %s227, %s232
          %s234 = smul.addr %s22, 128
          %s235 = scalar_lea.hbm %s3, %s234
          %s237 = sshll.u32 %s230, 4
          %s238 = int_to_ptr.vmem [resolvable:$true] %s237
          %240 = dma.hbm_to_vmem [thread:$0]  %s235, 128, %s238, %s227
        $region32: #{tpu_custom_call.1} parent=23 // pred_fallthru
          _
      $region24: #{tpu_custom_call.1} parent=5 // pred_fallthru
        _
      %p241 = scmp.le.s32.totalorder 1, %s22
      %p242 = scmp.lt.s32.totalorder %s22, 3
      %p243 = pnand %p241, %p242
      %p244 = pneg %p243
      // Predicated region
      $region33: #{tpu_custom_call.1} parent=5 // pred_check
        _
      $region34: #{tpu_custom_call.1} parent=5 // pred_check_branch
        %246 = sbr.rel (%p243) target = $region36
      $region35: #{tpu_custom_call.1} parent=5 // pred_region
        %s247 = ssub.s32 %s22, 1
        %s248 = sand.u32 %s27, 1
        %s249 = scalar_lea.sflag [#allocation5], %s248
        %s250 = sand.u32 %s35, 1
        %s251 = smul.addr %s250, 32
        %s252 = scalar_lea.vmem [#allocation4], %s251
        // Predicated region
        $region37: #{tpu_custom_call.1} parent=35 // pred_check
          %p253 = pneg %p48
        $region38: #{tpu_custom_call.1} parent=35 // pred_check_branch
          %255 = sbr.rel (%p253) target = $region40
        $region39: #{tpu_custom_call.1} parent=35 // pred_region
          %256 = dma.done %s249, 512
        $region40: #{tpu_custom_call.1} parent=35 // pred_fallthru
          _
        // Predicated region
        $region41: #{tpu_custom_call.1} parent=35 // pred_check
          %p257 = pneg %p69
        $region42: #{tpu_custom_call.1} parent=35 // pred_check_branch
          %259 = sbr.rel (%p257) target = $region44
        $region43: #{tpu_custom_call.1} parent=35 // pred_region
          %260 = dma.done [#allocation8], 2048
        $region44: #{tpu_custom_call.1} parent=35 // pred_fallthru
          _
        %s261 = sand.u32 %s27, 1
        %s262 = scalar_lea.sflag [#allocation5], %s261
        %s263 = sand.u32 %s103, 1
        %s264 = smul.addr %s263, 8
        %s265 = scalar_lea.vmem [#allocation9], %s264
        // Predicated region
        $region45: #{tpu_custom_call.1} parent=35 // pred_check
          %p266 = pneg %p116
        $region46: #{tpu_custom_call.1} parent=35 // pred_check_branch
          %268 = sbr.rel (%p266) target = $region48
        $region47: #{tpu_custom_call.1} parent=35 // pred_region
          %269 = dma.done %s262, 128
        $region48: #{tpu_custom_call.1} parent=35 // pred_fallthru
          _
        %s270 = sand.u32 %s27, 1
        %s271 = scalar_lea.sflag [#allocation5], %s270
        %s272 = sand.u32 %s35, 1
        %s273 = smul.addr %s272, 32
        %s274 = scalar_lea.vmem [#allocation4], %s273
        %p275 = pneg %p48
        %p276 = pneg %p45
        %p277 = pneg %p69
        %p278 = pneg %p66
        %p279 = pneg %p90
        %p280 = pneg %p87
        %s281 = sand.u32 %s27, 1
        %s282 = scalar_lea.sflag [#allocation5], %s281
        %s283 = sand.u32 %s103, 1
        %s284 = smul.addr %s283, 8
        %s285 = scalar_lea.vmem [#allocation9], %s284
        %p286 = pneg %p116
        %p287 = pneg %p113
        %p288 = pneg %p142
        %p289 = pneg %p139
        %s290 = sand.u32 %s129, 1
        %s291 = scalar_lea.sflag [#allocation6], %s290
        %s292 = sand.u32 %s129, 1
        %s293 = smul.addr %s292, 64
        %s294 = scalar_lea.vmem [#allocation10], %s293
        %p295 = pneg %p168
        %p296 = pneg %p165
        %s297 = sand.u32 %s155, 1
        %s298 = scalar_lea.sflag [#allocation12], %s297
        %s299 = sand.u32 %s155, 1
        %s300 = smul.addr %s299, 8
        %s301 = scalar_lea.vmem [#allocation11], %s300
        %v303 = vld [vmem:[%s2] sm:$0x1]
        %v304 = vld [vmem:[%s2 + $0x1] sm:$0x1]
        %v305 = vld [vmem:[%s252] sm:$0xf]
        %v306 = vld [vmem:[%s252 + $0x4] sm:$0xf]
        %v307 = vld [vmem:[%s252 + $0x8] sm:$0xf]
        %v308 = vld [vmem:[%s252 + $0xc] sm:$0xf]
        %v309 = vld [vmem:[%s252 + $0x10] sm:$0xf]
        %v310 = vld [vmem:[%s252 + $0x14] sm:$0xf]
        %v311 = vld [vmem:[%s252 + $0x18] sm:$0xf]
        %v312 = vld [vmem:[%s252 + $0x1c] sm:$0xf]
        %v313 = vld [vmem:[#allocation7] sm:$0xff]
        %v314 = vld [vmem:[#allocation7 + $0x8] sm:$0xff]
        %v315 = vld [vmem:[#allocation7 + $0x10] sm:$0xff]
        %v316 = vld [vmem:[#allocation7 + $0x18] sm:$0xff]
        %v317 = vld [vmem:[#allocation7 + $0x20] sm:$0xff]
        %v318 = vld [vmem:[#allocation7 + $0x28] sm:$0xff]
        %v319 = vld [vmem:[#allocation7 + $0x30] sm:$0xff]
        %v320 = vld [vmem:[#allocation7 + $0x38] sm:$0xff]
        %v321 = vld [vmem:[#allocation7 + $0x40] sm:$0xff]
        %v322 = vld [vmem:[#allocation7 + $0x48] sm:$0xff]
        %v323 = vld [vmem:[#allocation7 + $0x50] sm:$0xff]
        %v324 = vld [vmem:[#allocation7 + $0x58] sm:$0xff]
        %v325 = vld [vmem:[#allocation7 + $0x60] sm:$0xff]
        %v326 = vld [vmem:[#allocation7 + $0x68] sm:$0xff]
        %v327 = vld [vmem:[#allocation7 + $0x70] sm:$0xff]
        %v328 = vld [vmem:[#allocation7 + $0x78] sm:$0xff]
        %v337 = vunpack.c.l.b16 %v305
        %v338 = vunpack.c.l.b16 %v306
        %v339 = vunpack.c.l.b16 %v307
        %v340 = vunpack.c.l.b16 %v308
        %v341 = vunpack.c.l.b16 %v309
        %v342 = vunpack.c.l.b16 %v310
        %v343 = vunpack.c.l.b16 %v311
        %v344 = vunpack.c.l.b16 %v312
        %v345 = vpack.c.b16 %v338, %v337
        %v346 = vpack.c.b16 %v340, %v339
        %v347 = vpack.c.b16 %v342, %v341
        %v348 = vpack.c.b16 %v344, %v343
        %v365 = vunpack.c.l.b16 %v313
        %v366 = vunpack.c.h.b16 %v313
        %v367 = vunpack.c.l.b16 %v314
        %v368 = vunpack.c.h.b16 %v314
        %v369 = vunpack.c.l.b16 %v315
        %v370 = vunpack.c.h.b16 %v315
        %v371 = vunpack.c.l.b16 %v316
        %v372 = vunpack.c.h.b16 %v316
        %v373 = vunpack.c.l.b16 %v317
        %v374 = vunpack.c.h.b16 %v317
        %v375 = vunpack.c.l.b16 %v318
        %v376 = vunpack.c.h.b16 %v318
        %v377 = vunpack.c.l.b16 %v319
        %v378 = vunpack.c.h.b16 %v319
        %v379 = vunpack.c.l.b16 %v320
        %v380 = vunpack.c.h.b16 %v320
        %v381 = vunpack.c.l.b16 %v321
        %v382 = vunpack.c.h.b16 %v321
        %v383 = vunpack.c.l.b16 %v322
        %v384 = vunpack.c.h.b16 %v322
        %v385 = vunpack.c.l.b16 %v323
        %v386 = vunpack.c.h.b16 %v323
        %v387 = vunpack.c.l.b16 %v324
        %v388 = vunpack.c.h.b16 %v324
        %v389 = vunpack.c.l.b16 %v325
        %v390 = vunpack.c.h.b16 %v325
        %v391 = vunpack.c.l.b16 %v326
        %v392 = vunpack.c.h.b16 %v326
        %v393 = vunpack.c.l.b16 %v327
        %v394 = vunpack.c.h.b16 %v327
        %v395 = vunpack.c.l.b16 %v328
        %v396 = vunpack.c.h.b16 %v328
        %v397 = vpack.c.b16 %v369, %v365
        %v398 = vpack.c.b16 %v370, %v366
        %v399 = vpack.c.b16 %v371, %v367
        %v400 = vpack.c.b16 %v372, %v368
        %v401 = vpack.c.b16 %v377, %v373
        %v402 = vpack.c.b16 %v378, %v374
        %v403 = vpack.c.b16 %v379, %v375
        %v404 = vpack.c.b16 %v380, %v376
        %v405 = vpack.c.b16 %v385, %v381
        %v406 = vpack.c.b16 %v386, %v382
        %v407 = vpack.c.b16 %v387, %v383
        %v408 = vpack.c.b16 %v388, %v384
        %v409 = vpack.c.b16 %v393, %v389
        %v410 = vpack.c.b16 %v394, %v390
        %v411 = vpack.c.b16 %v395, %v391
        %v412 = vpack.c.b16 %v396, %v392
        %vm429 = vcmask 523264
        %v431 = vsel %vm429, %v345, 0
        %v434 = vsel %vm429, %v346, 0
        %v437 = vsel %vm429, %v347, 0
        %v440 = vsel %vm429, %v348, 0
        %442 = vmatprep.subr.bf16.mxu0 %v398
        %443 = vmatpush1.bf16.msra.mxu0 %v397
        %444 = vmatprep.subr.bf16.mxu0 %v402
        %445 = vmatpush1.bf16.msra.mxu0 %v401
        %446 = vmatprep.subr.bf16.mxu0 %v406
        %447 = vmatpush1.bf16.msra.mxu0 %v405
        %448 = vmatprep.subr.bf16.mxu0 %v410
        %449 = vmatpush1.bf16.msra.mxu0 %v409
        %450 = vmatprep.subr.bf16.mxu0 0
        %451 = vmatpush1.bf16.msra.mxu0 0
        %452 = vmatprep.subr.bf16.mxu0 0
        %453 = vmatpush1.bf16.msra.mxu0 0
        %454 = vmatprep.subr.bf16.mxu0 0
        %455 = vmatpush1.bf16.msra.mxu0 0
        %456 = vmatprep.subr.bf16.mxu0 0
        %457 = vmatpush1.bf16.msra.mxu0 0
        %458 = vmatprep.subr.bf16.mxu0 0
        %459 = vmatpush1.bf16.msra.mxu0 0
        %460 = vmatprep.subr.bf16.mxu0 0
        %461 = vmatpush1.bf16.msra.mxu0 0
        %462 = vmatprep.subr.bf16.mxu0 0
        %463 = vmatpush1.bf16.msra.mxu0 0
        %464 = vmatprep.subr.bf16.mxu0 0
        %465 = vmatpush1.bf16.msra.mxu0 0
        %466 = vmatprep.subr.bf16.mxu0 0
        %467 = vmatpush1.bf16.msra.mxu0 0
        %468 = vmatprep.subr.bf16.mxu0 0
        %469 = vmatpush1.bf16.msra.mxu0 0
        %470 = vmatprep.subr.bf16.mxu0 0
        %471 = vmatpush1.bf16.msra.mxu0 0
        %472 = vmatprep.subr.bf16.mxu0 0
        %473 = vmatpush1.bf16.msra.mxu0 0
        %474 = vmatprep.mubr.bf16.mxu0 0
        %475 = vmatmul.mubr.bf16.gmra.mrb[0].mxu0 %v431
        %v476 = vpop.f32.mrb[0].mxu0
        %v477 = vadd.f32 0.0, %v476
        %v478 = vpop.f32.mrb[0].mxu0
        %v479 = vadd.f32 0.0, %v478
        %v480 = vpop.f32.mrb[0].mxu0
        %v481 = vadd.f32 0.0, %v480
        %v482 = vpop.f32.mrb[0].mxu0
        %v483 = vadd.f32 0.0, %v482
        %484 = vmatprep.mubr.bf16.mxu0 0
        %485 = vmatmul.mubr.bf16.gmra.mrb[0].mxu0 %v434
        %v486 = vpop.f32.mrb[0].mxu0
        %v487 = vadd.f32 0.0, %v486
        %v488 = vpop.f32.mrb[0].mxu0
        %v489 = vadd.f32 0.0, %v488
        %v490 = vpop.f32.mrb[0].mxu0
        %v491 = vadd.f32 0.0, %v490
        %v492 = vpop.f32.mrb[0].mxu0
        %v493 = vadd.f32 0.0, %v492
        %494 = vmatprep.mubr.bf16.mxu0 0
        %495 = vmatmul.mubr.bf16.gmra.mrb[0].mxu0 %v437
        %v496 = vpop.f32.mrb[0].mxu0
        %v497 = vadd.f32 0.0, %v496
        %v498 = vpop.f32.mrb[0].mxu0
        %v499 = vadd.f32 0.0, %v498
        %v500 = vpop.f32.mrb[0].mxu0
        %v501 = vadd.f32 0.0, %v500
        %v502 = vpop.f32.mrb[0].mxu0
        %v503 = vadd.f32 0.0, %v502
        %504 = vmatprep.mubr.bf16.mxu0 0
        %505 = vmatmul.mubr.bf16.gmra.mrb[0].mxu0 %v440
        %v506 = vpop.f32.mrb[0].mxu0
        %v507 = vadd.f32 0.0, %v506
        %v508 = vpop.f32.mrb[0].mxu0
        %v509 = vadd.f32 0.0, %v508
        %v510 = vpop.f32.mrb[0].mxu0
        %v511 = vadd.f32 0.0, %v510
        %v512 = vpop.f32.mrb[0].mxu0
        %v513 = vadd.f32 0.0, %v512
        %514 = vdwg.mxu0
        %515 = vmatprep.subr.bf16.mxu0 %v400
        %516 = vmatpush1.bf16.msra.mxu0 %v399
        %517 = vmatprep.subr.bf16.mxu0 %v404
        %518 = vmatpush1.bf16.msra.mxu0 %v403
        %519 = vmatprep.subr.bf16.mxu0 %v408
        %520 = vmatpush1.bf16.msra.mxu0 %v407
        %521 = vmatprep.subr.bf16.mxu0 %v412
        %522 = vmatpush1.bf16.msra.mxu0 %v411
        %523 = vmatprep.subr.bf16.mxu0 0
        %524 = vmatpush1.bf16.msra.mxu0 0
        %525 = vmatprep.subr.bf16.mxu0 0
        %526 = vmatpush1.bf16.msra.mxu0 0
        %527 = vmatprep.subr.bf16.mxu0 0
        %528 = vmatpush1.bf16.msra.mxu0 0
        %529 = vmatprep.subr.bf16.mxu0 0
        %530 = vmatpush1.bf16.msra.mxu0 0
        %531 = vmatprep.subr.bf16.mxu0 0
        %532 = vmatpush1.bf16.msra.mxu0 0
        %533 = vmatprep.subr.bf16.mxu0 0
        %534 = vmatpush1.bf16.msra.mxu0 0
        %535 = vmatprep.subr.bf16.mxu0 0
        %536 = vmatpush1.bf16.msra.mxu0 0
        %537 = vmatprep.subr.bf16.mxu0 0
        %538 = vmatpush1.bf16.msra.mxu0 0
        %539 = vmatprep.subr.bf16.mxu0 0
        %540 = vmatpush1.bf16.msra.mxu0 0
        %541 = vmatprep.subr.bf16.mxu0 0
        %542 = vmatpush1.bf16.msra.mxu0 0
        %543 = vmatprep.subr.bf16.mxu0 0
        %544 = vmatpush1.bf16.msra.mxu0 0
        %545 = vmatprep.subr.bf16.mxu0 0
        %546 = vmatpush1.bf16.msra.mxu0 0
        %547 = vmatprep.mubr.bf16.mxu0 0
        %548 = vmatmul.mubr.bf16.gmra.mrb[0].mxu0 %v431
        %v549 = vpop.f32.mrb[0].mxu0
        %v550 = vadd.f32 0.0, %v549
        %v551 = vpop.f32.mrb[0].mxu0
        %v552 = vadd.f32 0.0, %v551
        %v553 = vpop.f32.mrb[0].mxu0
        %v554 = vadd.f32 0.0, %v553
        %v555 = vpop.f32.mrb[0].mxu0
        %v556 = vadd.f32 0.0, %v555
        %557 = vmatprep.mubr.bf16.mxu0 0
        %558 = vmatmul.mubr.bf16.gmra.mrb[0].mxu0 %v434
        %v559 = vpop.f32.mrb[0].mxu0
        %v560 = vadd.f32 0.0, %v559
        %v561 = vpop.f32.mrb[0].mxu0
        %v562 = vadd.f32 0.0, %v561
        %v563 = vpop.f32.mrb[0].mxu0
        %v564 = vadd.f32 0.0, %v563
        %v565 = vpop.f32.mrb[0].mxu0
        %v566 = vadd.f32 0.0, %v565
        %567 = vmatprep.mubr.bf16.mxu0 0
        %568 = vmatmul.mubr.bf16.gmra.mrb[0].mxu0 %v437
        %v569 = vpop.f32.mrb[0].mxu0
        %v570 = vadd.f32 0.0, %v569
        %v571 = vpop.f32.mrb[0].mxu0
        %v572 = vadd.f32 0.0, %v571
        %v573 = vpop.f32.mrb[0].mxu0
        %v574 = vadd.f32 0.0, %v573
        %v575 = vpop.f32.mrb[0].mxu0
        %v576 = vadd.f32 0.0, %v575
        %577 = vmatprep.mubr.bf16.mxu0 0
        %578 = vmatmul.mubr.bf16.gmra.mrb[0].mxu0 %v440
        %v579 = vpop.f32.mrb[0].mxu0
        %v580 = vadd.f32 0.0, %v579
        %v581 = vpop.f32.mrb[0].mxu0
        %v582 = vadd.f32 0.0, %v581
        %v583 = vpop.f32.mrb[0].mxu0
        %v584 = vadd.f32 0.0, %v583
        %v585 = vpop.f32.mrb[0].mxu0
        %v586 = vadd.f32 0.0, %v585
        %587 = vdwg.mxu0
        %v588 = vlaneseq
        %v589 = vshrl.u32 %v588, 7
        %v590 = vsub.s32 0, %v589
        %v591 = vrot.slane %v303, %v590
        %v592 = vadd.f32 %v479, %v591
        %v593 = vadd.f32 %v483, %v591
        %v594 = vadd.f32 %v489, %v591
        %v595 = vadd.f32 %v493, %v591
        %v596 = vadd.f32 %v499, %v591
        %v597 = vadd.f32 %v503, %v591
        %v598 = vadd.f32 %v509, %v591
        %v599 = vadd.f32 %v513, %v591
        %v600 = vxor.u32 %v592, 2147483648
        %v601 = vxor.u32 %v593, 2147483648
        %v602 = vxor.u32 %v594, 2147483648
        %v603 = vxor.u32 %v595, 2147483648
        %v604 = vxor.u32 %v596, 2147483648
        %v605 = vxor.u32 %v597, 2147483648
        %v606 = vxor.u32 %v598, 2147483648
        %v607 = vxor.u32 %v599, 2147483648
        %v608 = vmul.f32 %v600, 1.442695
        %v609 = vpow.pop %v608
        %v610 = vmul.f32 %v601, 1.442695
        %v611 = vpow.pop %v610
        %v612 = vmul.f32 %v602, 1.442695
        %v613 = vpow.pop %v612
        %v614 = vmul.f32 %v603, 1.442695
        %v615 = vpow.pop %v614
        %v616 = vmul.f32 %v604, 1.442695
        %v617 = vpow.pop %v616
        %v618 = vmul.f32 %v605, 1.442695
        %v619 = vpow.pop %v618
        %v620 = vmul.f32 %v606, 1.442695
        %v621 = vpow.pop %v620
        %v622 = vmul.f32 %v607, 1.442695
        %v623 = vpow.pop %v622
        %v624 = vadd.f32 %v609, 1.0
        %v625 = vadd.f32 %v611, 1.0
        %v626 = vadd.f32 %v613, 1.0
        %v627 = vadd.f32 %v615, 1.0
        %v628 = vadd.f32 %v617, 1.0
        %v629 = vadd.f32 %v619, 1.0
        %v630 = vadd.f32 %v621, 1.0
        %v631 = vadd.f32 %v623, 1.0
        %v632 = vrcp.pop %v624
        %v633 = vmul.f32 1.0, %v632
        %v634 = vrcp.pop %v625
        %v635 = vmul.f32 1.0, %v634
        %v636 = vrcp.pop %v626
        %v637 = vmul.f32 1.0, %v636
        %v638 = vrcp.pop %v627
        %v639 = vmul.f32 1.0, %v638
        %v640 = vrcp.pop %v628
        %v641 = vmul.f32 1.0, %v640
        %v642 = vrcp.pop %v629
        %v643 = vmul.f32 1.0, %v642
        %v644 = vrcp.pop %v630
        %v645 = vmul.f32 1.0, %v644
        %v646 = vrcp.pop %v631
        %v647 = vmul.f32 1.0, %v646
        %v648 = vsub.f32 1.0, %v633
        %v649 = vsub.f32 1.0, %v635
        %v650 = vsub.f32 1.0, %v637
        %v651 = vsub.f32 1.0, %v639
        %v652 = vsub.f32 1.0, %v641
        %v653 = vsub.f32 1.0, %v643
        %v654 = vsub.f32 1.0, %v645
        %v655 = vsub.f32 1.0, %v647
        %v656 = vmul.f32 %v477, %v648
        %v657 = vmul.f32 %v481, %v649
        %v658 = vmul.f32 %v487, %v650
        %v659 = vmul.f32 %v491, %v651
        %v660 = vmul.f32 %v497, %v652
        %v661 = vmul.f32 %v501, %v653
        %v662 = vmul.f32 %v507, %v654
        %v663 = vmul.f32 %v511, %v655
        %664 = vst [vmem:[#allocation2] sm:$0xff] %v656
        %665 = vst [vmem:[#allocation2 + $0x10] sm:$0xff] %v657
        %666 = vst [vmem:[#allocation2 + $0x20] sm:$0xff] %v658
        %667 = vst [vmem:[#allocation2 + $0x30] sm:$0xff] %v659
        %668 = vst [vmem:[#allocation2 + $0x40] sm:$0xff] %v660
        %669 = vst [vmem:[#allocation2 + $0x50] sm:$0xff] %v661
        %670 = vst [vmem:[#allocation2 + $0x60] sm:$0xff] %v662
        %671 = vst [vmem:[#allocation2 + $0x70] sm:$0xff] %v663
        %672 = vst [vmem:[#allocation2 + $0x8] sm:$0xff] %v633
        %673 = vst [vmem:[#allocation2 + $0x18] sm:$0xff] %v635
        %674 = vst [vmem:[#allocation2 + $0x28] sm:$0xff] %v637
        %675 = vst [vmem:[#allocation2 + $0x38] sm:$0xff] %v639
        %676 = vst [vmem:[#allocation2 + $0x48] sm:$0xff] %v641
        %677 = vst [vmem:[#allocation2 + $0x58] sm:$0xff] %v643
        %678 = vst [vmem:[#allocation2 + $0x68] sm:$0xff] %v645
        %679 = vst [vmem:[#allocation2 + $0x78] sm:$0xff] %v647
        %v680 = vlaneseq
        %v681 = vshrl.u32 %v680, 7
        %v682 = vsub.s32 0, %v681
        %v683 = vrot.slane %v304, %v682
        %v684 = vadd.f32 %v550, %v683
        %v685 = vadd.f32 %v554, %v683
        %v686 = vadd.f32 %v560, %v683
        %v687 = vadd.f32 %v564, %v683
        %v688 = vadd.f32 %v570, %v683
        %v689 = vadd.f32 %v574, %v683
        %v690 = vadd.f32 %v580, %v683
        %v691 = vadd.f32 %v584, %v683
        %v692 = vxor.u32 %v684, 2147483648
        %v693 = vxor.u32 %v685, 2147483648
        %v694 = vxor.u32 %v686, 2147483648
        %v695 = vxor.u32 %v687, 2147483648
        %v696 = vxor.u32 %v688, 2147483648
        %v697 = vxor.u32 %v689, 2147483648
        %v698 = vxor.u32 %v690, 2147483648
        %v699 = vxor.u32 %v691, 2147483648
        %v700 = vmul.f32 %v692, 1.442695
        %v701 = vpow.pop %v700
        %v702 = vmul.f32 %v693, 1.442695
        %v703 = vpow.pop %v702
        %v704 = vmul.f32 %v694, 1.442695
        %v705 = vpow.pop %v704
        %v706 = vmul.f32 %v695, 1.442695
        %v707 = vpow.pop %v706
        %v708 = vmul.f32 %v696, 1.442695
        %v709 = vpow.pop %v708
        %v710 = vmul.f32 %v697, 1.442695
        %v711 = vpow.pop %v710
        %v712 = vmul.f32 %v698, 1.442695
        %v713 = vpow.pop %v712
        %v714 = vmul.f32 %v699, 1.442695
        %v715 = vpow.pop %v714
        %v716 = vadd.f32 %v701, 1.0
        %v717 = vadd.f32 %v703, 1.0
        %v718 = vadd.f32 %v705, 1.0
        %v719 = vadd.f32 %v707, 1.0
        %v720 = vadd.f32 %v709, 1.0
        %v721 = vadd.f32 %v711, 1.0
        %v722 = vadd.f32 %v713, 1.0
        %v723 = vadd.f32 %v715, 1.0
        %v724 = vrcp.pop %v716
        %v725 = vmul.f32 1.0, %v724
        %v726 = vrcp.pop %v717
        %v727 = vmul.f32 1.0, %v726
        %v728 = vrcp.pop %v718
        %v729 = vmul.f32 1.0, %v728
        %v730 = vrcp.pop %v719
        %v731 = vmul.f32 1.0, %v730
        %v732 = vrcp.pop %v720
        %v733 = vmul.f32 1.0, %v732
        %v734 = vrcp.pop %v721
        %v735 = vmul.f32 1.0, %v734
        %v736 = vrcp.pop %v722
        %v737 = vmul.f32 1.0, %v736
        %v738 = vrcp.pop %v723
        %v739 = vmul.f32 1.0, %v738
        %v740 = vpack.c.bf16 %v725, %v725
        %v741 = vpack.c.bf16 %v727, %v727
        %v742 = vpack.c.bf16 %v729, %v729
        %v743 = vpack.c.bf16 %v731, %v731
        %v744 = vpack.c.bf16 %v733, %v733
        %v745 = vpack.c.bf16 %v735, %v735
        %v746 = vpack.c.bf16 %v737, %v737
        %v747 = vpack.c.bf16 %v739, %v739
        %748 = vst [vmem:[#allocation3] sm:$0xf] %v740
        %749 = vst [vmem:[#allocation3 + $0x8] sm:$0xf] %v741
        %750 = vst [vmem:[#allocation3 + $0x10] sm:$0xf] %v742
        %751 = vst [vmem:[#allocation3 + $0x18] sm:$0xf] %v743
        %752 = vst [vmem:[#allocation3 + $0x20] sm:$0xf] %v744
        %753 = vst [vmem:[#allocation3 + $0x28] sm:$0xf] %v745
        %754 = vst [vmem:[#allocation3 + $0x30] sm:$0xf] %v746
        %755 = vst [vmem:[#allocation3 + $0x38] sm:$0xf] %v747
        %v756 = vpack.c.bf16 %v552, %v552
        %v757 = vpack.c.bf16 %v556, %v556
        %v758 = vpack.c.bf16 %v562, %v562
        %v759 = vpack.c.bf16 %v566, %v566
        %v760 = vpack.c.bf16 %v572, %v572
        %v761 = vpack.c.bf16 %v576, %v576
        %v762 = vpack.c.bf16 %v582, %v582
        %v763 = vpack.c.bf16 %v586, %v586
        %764 = vst [vmem:[#allocation3 + $0x4] sm:$0xf] %v756
        %765 = vst [vmem:[#allocation3 + $0xc] sm:$0xf] %v757
        %766 = vst [vmem:[#allocation3 + $0x14] sm:$0xf] %v758
        %767 = vst [vmem:[#allocation3 + $0x1c] sm:$0xf] %v759
        %768 = vst [vmem:[#allocation3 + $0x24] sm:$0xf] %v760
        %769 = vst [vmem:[#allocation3 + $0x2c] sm:$0xf] %v761
        %770 = vst [vmem:[#allocation3 + $0x34] sm:$0xf] %v762
        %771 = vst [vmem:[#allocation3 + $0x3c] sm:$0xf] %v763
        %v772 = vld [vmem:[%s265] sm:$0xff]
        %v773 = vld [vmem:[#allocation2] sm:$0xff]
        %v774 = vld [vmem:[#allocation2 + $0x8] sm:$0xff]
        %v775 = vmul.f32 %v772, %v774
        %v776 = vadd.f32 %v773, %v775
        %v777 = vld [vmem:[#allocation3] sm:$0xf]
        %v778 = vunpack.c.l.bf16 %v777
        %v779 = vld [vmem:[#allocation3 + $0x4] sm:$0xf]
        %v780 = vunpack.c.l.bf16 %v779
        %v781 = vsub.f32 1.0, %v778
        %v782 = vmul.f32 %v780, %v781
        %v783 = vtanh.pop %v776
        %v784 = vmul.f32 %v783, %v778
        %v785 = vadd.f32 %v782, %v784
        %786 = vst [vmem:[%s294] sm:$0xff] %v785
        %s787 = scalar_lea.vmem [#allocation2], 16
        %v788 = vld [vmem:[%s787] sm:$0xff]
        %v789 = vld [vmem:[%s787 + $0x8] sm:$0xff]
        %v790 = vmul.f32 %v776, %v789
        %v791 = vadd.f32 %v788, %v790
        %s792 = scalar_lea.vmem [#allocation3], 8
        %v793 = vld [vmem:[%s792] sm:$0xf]
        %v794 = vunpack.c.l.bf16 %v793
        %v795 = vld [vmem:[%s792 + $0x4] sm:$0xf]
        %v796 = vunpack.c.l.bf16 %v795
        %v797 = vsub.f32 1.0, %v794
        %v798 = vmul.f32 %v796, %v797
        %v799 = vtanh.pop %v791
        %v800 = vmul.f32 %v799, %v794
        %v801 = vadd.f32 %v798, %v800
        %s802 = scalar_lea.vmem %s294, 8 [#allocation10]
        %803 = vst [vmem:[%s802] sm:$0xff] %v801
        %s804 = scalar_lea.vmem [#allocation2], 32
        %v805 = vld [vmem:[%s804] sm:$0xff]
        %v806 = vld [vmem:[%s804 + $0x8] sm:$0xff]
        %v807 = vmul.f32 %v791, %v806
        %v808 = vadd.f32 %v805, %v807
        %s809 = scalar_lea.vmem [#allocation3], 16
        %v810 = vld [vmem:[%s809] sm:$0xf]
        %v811 = vunpack.c.l.bf16 %v810
        %v812 = vld [vmem:[%s809 + $0x4] sm:$0xf]
        %v813 = vunpack.c.l.bf16 %v812
        %v814 = vsub.f32 1.0, %v811
        %v815 = vmul.f32 %v813, %v814
        %v816 = vtanh.pop %v808
        %v817 = vmul.f32 %v816, %v811
        %v818 = vadd.f32 %v815, %v817
        %s819 = scalar_lea.vmem %s294, 16 [#allocation10]
        %820 = vst [vmem:[%s819] sm:$0xff] %v818
        %s821 = scalar_lea.vmem [#allocation2], 48
        %v822 = vld [vmem:[%s821] sm:$0xff]
        %v823 = vld [vmem:[%s821 + $0x8] sm:$0xff]
        %v824 = vmul.f32 %v808, %v823
        %v825 = vadd.f32 %v822, %v824
        %s826 = scalar_lea.vmem [#allocation3], 24
        %v827 = vld [vmem:[%s826] sm:$0xf]
        %v828 = vunpack.c.l.bf16 %v827
        %v829 = vld [vmem:[%s826 + $0x4] sm:$0xf]
        %v830 = vunpack.c.l.bf16 %v829
        %v831 = vsub.f32 1.0, %v828
        %v832 = vmul.f32 %v830, %v831
        %v833 = vtanh.pop %v825
        %v834 = vmul.f32 %v833, %v828
        %v835 = vadd.f32 %v832, %v834
        %s836 = scalar_lea.vmem %s294, 24 [#allocation10]
        %837 = vst [vmem:[%s836] sm:$0xff] %v835
        %s838 = scalar_lea.vmem [#allocation2], 64
        %v839 = vld [vmem:[%s838] sm:$0xff]
        %v840 = vld [vmem:[%s838 + $0x8] sm:$0xff]
        %v841 = vmul.f32 %v825, %v840
        %v842 = vadd.f32 %v839, %v841
        %s843 = scalar_lea.vmem [#allocation3], 32
        %v844 = vld [vmem:[%s843] sm:$0xf]
        %v845 = vunpack.c.l.bf16 %v844
        %v846 = vld [vmem:[%s843 + $0x4] sm:$0xf]
        %v847 = vunpack.c.l.bf16 %v846
        %v848 = vsub.f32 1.0, %v845
        %v849 = vmul.f32 %v847, %v848
        %v850 = vtanh.pop %v842
        %v851 = vmul.f32 %v850, %v845
        %v852 = vadd.f32 %v849, %v851
        %s853 = scalar_lea.vmem %s294, 32 [#allocation10]
        %854 = vst [vmem:[%s853] sm:$0xff] %v852
        %s855 = scalar_lea.vmem [#allocation2], 80
        %v856 = vld [vmem:[%s855] sm:$0xff]
        %v857 = vld [vmem:[%s855 + $0x8] sm:$0xff]
        %v858 = vmul.f32 %v842, %v857
        %v859 = vadd.f32 %v856, %v858
        %s860 = scalar_lea.vmem [#allocation3], 40
        %v861 = vld [vmem:[%s860] sm:$0xf]
        %v862 = vunpack.c.l.bf16 %v861
        %v863 = vld [vmem:[%s860 + $0x4] sm:$0xf]
        %v864 = vunpack.c.l.bf16 %v863
        %v865 = vsub.f32 1.0, %v862
        %v866 = vmul.f32 %v864, %v865
        %v867 = vtanh.pop %v859
        %v868 = vmul.f32 %v867, %v862
        %v869 = vadd.f32 %v866, %v868
        %s870 = scalar_lea.vmem %s294, 40 [#allocation10]
        %871 = vst [vmem:[%s870] sm:$0xff] %v869
        %s872 = scalar_lea.vmem [#allocation2], 96
        %v873 = vld [vmem:[%s872] sm:$0xff]
        %v874 = vld [vmem:[%s872 + $0x8] sm:$0xff]
        %v875 = vmul.f32 %v859, %v874
        %v876 = vadd.f32 %v873, %v875
        %s877 = scalar_lea.vmem [#allocation3], 48
        %v878 = vld [vmem:[%s877] sm:$0xf]
        %v879 = vunpack.c.l.bf16 %v878
        %v880 = vld [vmem:[%s877 + $0x4] sm:$0xf]
        %v881 = vunpack.c.l.bf16 %v880
        %v882 = vsub.f32 1.0, %v879
        %v883 = vmul.f32 %v881, %v882
        %v884 = vtanh.pop %v876
        %v885 = vmul.f32 %v884, %v879
        %v886 = vadd.f32 %v883, %v885
        %s887 = scalar_lea.vmem %s294, 48 [#allocation10]
        %888 = vst [vmem:[%s887] sm:$0xff] %v886
        %s889 = scalar_lea.vmem [#allocation2], 112
        %v890 = vld [vmem:[%s889] sm:$0xff]
        %v891 = vld [vmem:[%s889 + $0x8] sm:$0xff]
        %v892 = vmul.f32 %v876, %v891
        %v893 = vadd.f32 %v890, %v892
        %s894 = scalar_lea.vmem [#allocation3], 56
        %v895 = vld [vmem:[%s894] sm:$0xf]
        %v896 = vunpack.c.l.bf16 %v895
        %v897 = vld [vmem:[%s894 + $0x4] sm:$0xf]
        %v898 = vunpack.c.l.bf16 %v897
        %v899 = vsub.f32 1.0, %v896
        %v900 = vmul.f32 %v898, %v899
        %v901 = vtanh.pop %v893
        %v902 = vmul.f32 %v901, %v896
        %v903 = vadd.f32 %v900, %v902
        %s904 = scalar_lea.vmem %s294, 56 [#allocation10]
        %905 = vst [vmem:[%s904] sm:$0xff] %v903
        %906 = vst [vmem:[%s301] sm:$0xff] %v893
        %s907 = sand.u32 %s129, 1
        %s908 = scalar_lea.sflag [#allocation6], %s907
        %s909 = sand.u32 %s129, 1
        %s910 = smul.addr %s909, 64
        %s911 = scalar_lea.vmem [#allocation10], %s910
        %s912 = sand.u32 %s155, 1
        %s913 = scalar_lea.sflag [#allocation12], %s912
        %s914 = sand.u32 %s155, 1
        %s915 = smul.addr %s914, 8
        %s916 = scalar_lea.vmem [#allocation11], %s915
        // Predicated region
        $region49: #{tpu_custom_call.1} parent=35 // pred_check
          %p917 = pneg %p139
        $region50: #{tpu_custom_call.1} parent=35 // pred_check_branch
          %919 = sbr.rel (%p917) target = $region52
        $region51: #{tpu_custom_call.1} parent=35 // pred_region
          %s921 = ssub.s32 1024, 1024
          %922 = vsyncadd %s908, %s921
          %s923 = smul.addr %s27, 128
          %s924 = scalar_lea.hbm %s4, %s923
          %s925 = sshll.u32 %s911, 4
          %s926 = int_to_ptr.vmem [resolvable:$true] %s925
          %931 = dma.vmem_to_hbm [thread:$0]  %s926, 1024, %s924, %s908, 128, 256, 8
        $region52: #{tpu_custom_call.1} parent=35 // pred_fallthru
          _
        // Predicated region
        $region53: #{tpu_custom_call.1} parent=35 // pred_check
          %p932 = pneg %p165
        $region54: #{tpu_custom_call.1} parent=35 // pred_check_branch
          %934 = sbr.rel (%p932) target = $region56
        $region55: #{tpu_custom_call.1} parent=35 // pred_region
          %s936 = ssub.s32 128, 128
          %937 = vsyncadd %s913, %s936
          %s938 = smul.addr %s27, 128
          %s939 = scalar_lea.hbm %s5, %s938
          %s941 = sshll.u32 %s916, 4
          %s942 = int_to_ptr.vmem [resolvable:$true] %s941
          %944 = dma.vmem_to_hbm [thread:$0]  %s942, 128, %s939, %s913
        $region56: #{tpu_custom_call.1} parent=35 // pred_fallthru
          _
      $region36: #{tpu_custom_call.1} parent=5 // pred_fallthru
        _
      %p945 = scmp.le.s32.totalorder 2, %s22
      // Predicated region
      $region57: #{tpu_custom_call.1} parent=5 // pred_check
        %p946 = pneg %p945
      $region58: #{tpu_custom_call.1} parent=5 // pred_check_branch
        %948 = sbr.rel (%p946) target = $region60
      $region59: #{tpu_custom_call.1} parent=5 // pred_region
        %s949 = ssub.s32 %s22, 2
        // Predicated region
        $region61: #{tpu_custom_call.1} parent=59 // pred_check
          %p950 = pneg %p145
        $region62: #{tpu_custom_call.1} parent=59 // pred_check_branch
          %952 = sbr.rel (%p950) target = $region64
        $region63: #{tpu_custom_call.1} parent=59 // pred_region
          %s953 = sand.u32 %s130, 1
          %s954 = scalar_lea.sflag [#allocation6], %s953
          %s955 = sand.u32 %s130, 1
          %s956 = smul.addr %s955, 64
          %s957 = scalar_lea.vmem [#allocation10], %s956
          %958 = dma.done %s954, 1024
        $region64: #{tpu_custom_call.1} parent=59 // pred_fallthru
          _
        // Predicated region
        $region65: #{tpu_custom_call.1} parent=59 // pred_check
          %p959 = pneg %p171
        $region66: #{tpu_custom_call.1} parent=59 // pred_check_branch
          %961 = sbr.rel (%p959) target = $region68
        $region67: #{tpu_custom_call.1} parent=59 // pred_region
          %s962 = sand.u32 %s156, 1
          %s963 = scalar_lea.sflag [#allocation12], %s962
          %s964 = sand.u32 %s156, 1
          %s965 = smul.addr %s964, 8
          %s966 = scalar_lea.vmem [#allocation11], %s965
          %967 = dma.done %s963, 128
        $region68: #{tpu_custom_call.1} parent=59 // pred_fallthru
          _
      $region60: #{tpu_custom_call.1} parent=5 // pred_fallthru
        _
    $region6: #{tpu_custom_call.1} parent=1 // loop_footer
      %s26 = sadd.s32 1, %s22
    $region7: #{tpu_custom_call.1} parent=1 // loop_footer_branch
      %21 = sbr.rel target = $region3
    $region8: #{tpu_custom_call.1} parent=1 // loop_exit
      _
    %968 = vsyncpa [#allocation5], 1
    %s969 = scalar_lea.sflag [#allocation5], 1
    %970 = vsyncpa %s969, 1
    %971 = vsyncpa [#allocation8], 1
    %972 = vsyncpa [#allocation6], 1
    %s973 = scalar_lea.sflag [#allocation6], 1
    %974 = vsyncpa %s973, 1
    %975 = vsyncpa [#allocation12], 1
    %s976 = scalar_lea.sflag [#allocation12], 1
    %977 = vsyncpa %s976, 1

</llo_original>
